<compile_context>
chip_gen: v7x
topology: tpu7x:2x2x1
jax: 0.10.0
libtpu: 0.0.40
codegen_flags: <defaults>
</compile_context>

<pallas_src>
import functools

import jax
import jax.numpy as jnp
from jax.experimental import pallas as pl
from jax.experimental.pallas import tpu as pltpu


def _round_up(x, m):
    return ((x + m - 1) // m) * m


# ---------------------------------------------------------------------------
# Fused kernel: stream fusion (1x1x1 conv) + temporal mean + 1x1 head + sigmoid
# One invocation handles one (batch n, spatial tile j) block over ALL T.
# Layout: channels on sublanes, flattened spatial (HW tile) on lanes.
# ---------------------------------------------------------------------------
def fused_kernel(x1_ref, x2_ref, w1t_ref, w2t_ref, bf_ref, wht_ref, bh_ref,
                 o_ref, *, T):
    w1 = w1t_ref[...]                      # (Cemb, C1)
    w2 = w2t_ref[...]                      # (Cemb, C2)
    cemb = w1.shape[0]
    tile = o_ref.shape[-1]
    # Hoist the bias lane-broadcast out of the temporal loop.
    b = jnp.broadcast_to(bf_ref[...], (cemb, tile))

    acc = jnp.zeros((cemb, tile), jnp.float32)
    for t in range(T):                     # T is a static compile-time constant
        y = (
            jnp.dot(w1, x1_ref[:, t, :], preferred_element_type=jnp.float32)
            + jnp.dot(w2, x2_ref[:, t, :], preferred_element_type=jnp.float32)
            + b
        )
        acc = acc + jnp.maximum(y, 0.0)

    # w_head is pre-scaled by 1/T in the wrapper, so this matmul on the
    # temporal SUM is exactly (head @ temporal MEAN).
    logits = (
        jnp.dot(wht_ref[...], acc, preferred_element_type=jnp.float32)
        + bh_ref[...]
    )                                      # (NClasses, tile)
    o_ref[...] = jax.nn.sigmoid(logits).astype(o_ref.dtype)


# ---------------------------------------------------------------------------
# Spatial-tile selection from a VMEM budget (no padding in the common case).
# ---------------------------------------------------------------------------
def _choose_tile(HW, N, c1, c2, t_sub, in_itemsize, cemb, ncls, vmem_budget):
    # VMEM bytes needed per lane of spatial tile:
    per_lane = (
        2 * (c1 + c2) * t_sub * in_itemsize   # double-buffered input blocks
        + 2 * _round_up(ncls, 8) * 4          # double-buffered output block
        + 4 * cemb * 4                        # f32 accumulator + temporaries
    )
    budget = max(128, (vmem_budget // per_lane) // 128 * 128)
    # Keep >= 2 parallel grid blocks so both TensorCores (v7x) stay busy.
    if N == 1 and HW > 128:
        budget = min(budget, max(128, _round_up(pl.cdiv(HW, 2), 128)))
    if HW <= budget:
        return HW, per_lane                   # full-extent block, no padding
    t = budget
    while t >= 128:                           # largest 128-multiple divisor
        if HW % t == 0:
            return t, per_lane
        t -= 128
    return budget, per_lane                   # ragged: wrapper pads (rare)


# ---------------------------------------------------------------------------
# Full forward (PyTorch-facing layouts: NCTHW inputs, NCHW output)
# ---------------------------------------------------------------------------
def ptavit3dca_dn_forward(input_t1, input_t2, params,
                          vmem_budget_bytes=40 * 1024 * 1024):
    """input_t1: (N, C_s2, T, H, W); input_t2: (N, C_s1, T, H, W).
    Returns (N, NClasses, H, W) with sigmoid activation."""
    N, C1, T, H, W = input_t1.shape
    C2 = input_t2.shape[1]
    HW = H * W

    cdt = input_t1.dtype
    w1t = params["w_s2_T"].astype(cdt)                    # (Cemb, C1)
    w2t = params["w_s1_T"].astype(cdt)                    # (Cemb, C2)
    bf = params["b_fuse"].astype(jnp.float32)             # (Cemb, 1)
    # Fold the temporal-mean scale (x.mean(dim=2)) into the tiny head weight.
    wht = params["w_head_T"].astype(jnp.float32) / T      # (NClasses, Cemb)
    bh = params["b_head"].astype(jnp.float32)             # (NClasses, 1)
    Cemb = w1t.shape[0]
    NClasses = wht.shape[0]

    in_itemsize = jnp.dtype(cdt).itemsize
    sub = 8 * (4 // in_itemsize)          # sublane multiple: 8 (f32), 16 (bf16)
    t_sub = _round_up(T, sub)

    tile, per_lane = _choose_tile(HW, N, C1, C2, t_sub, in_itemsize,
                                  Cemb, NClasses, vmem_budget_bytes)

    # NCTHW is already channel-major: pure reshape, no transpose.
    x1 = input_t1.reshape(N, C1, T, HW)
    x2 = input_t2.reshape(N, C2, T, HW)
    HWp = _round_up(HW, tile)
    if HWp != HW:
        # TODO(synk): ragged last tile could use an in-kernel masked store
        # instead of this HBM pad copy (rare fallback path).
        pad = ((0, 0), (0, 0), (0, 0), (0, HWp - HW))
        x1 = jnp.pad(x1, pad)
        x2 = jnp.pad(x2, pad)
    num_j = HWp // tile

    need = per_lane * tile + (1 << 20)
    vmem_limit = int(min(max(need + (8 << 20), 32 << 20), 56 << 20))

    out = pl.pallas_call(
        functools.partial(fused_kernel, T=T),
        out_shape=jax.ShapeDtypeStruct((N, NClasses, HWp), jnp.float32),
        grid_spec=pltpu.PrefetchScalarGridSpec(
            num_scalar_prefetch=0,
            grid=(N, num_j),
            in_specs=[
                pl.BlockSpec((pl.Squeezed(), C1, T, tile),
                             lambda n, j: (n, 0, 0, j)),
                pl.BlockSpec((pl.Squeezed(), C2, T, tile),
                             lambda n, j: (n, 0, 0, j)),
                pl.BlockSpec((Cemb, C1), lambda n, j: (0, 0)),
                pl.BlockSpec((Cemb, C2), lambda n, j: (0, 0)),
                pl.BlockSpec((Cemb, 1), lambda n, j: (0, 0)),
                pl.BlockSpec((NClasses, Cemb), lambda n, j: (0, 0)),
                pl.BlockSpec((NClasses, 1), lambda n, j: (0, 0)),
            ],
            out_specs=pl.BlockSpec((pl.Squeezed(), NClasses, tile),
                                   lambda n, j: (n, 0, j)),
        ),
        compiler_params=pltpu.CompilerParams(
            dimension_semantics=("parallel", "parallel"),
            vmem_limit_bytes=vmem_limit,
        ),
    )(x1, x2, w1t, w2t, bf, wht, bh)

    if HWp != HW:
        out = out[:, :, :HW]
    # Output is already channel-major (NCHW); no final transpose.
    return out.reshape(N, NClasses, H, W)


# ---------------------------------------------------------------------------
# Pure-JAX reference for the implemented path (correctness check)
# ---------------------------------------------------------------------------
def reference_forward(input_t1, input_t2, params):
    x1 = input_t1.astype(jnp.float32)
    x2 = input_t2.astype(jnp.float32)
    w1 = params["w_s2_T"].astype(jnp.float32)
    w2 = params["w_s1_T"].astype(jnp.float32)
    y = (
        jnp.einsum("ec,ncthw->nethw", w1, x1)
        + jnp.einsum("ec,ncthw->nethw", w2, x2)
        + params["b_fuse"].astype(jnp.float32).reshape(1, -1, 1, 1, 1)
    )
    y = jnp.maximum(y, 0.0)
    m = y.mean(axis=2)                                     # x.mean(dim=2)
    logits = (
        jnp.einsum("ke,nehw->nkhw", params["w_head_T"].astype(jnp.float32), m)
        + params["b_head"].astype(jnp.float32).reshape(1, -1, 1, 1)
    )
    return jax.nn.sigmoid(logits)


def init_params(key, c_s2, c_s1, nfilters_embed, nclasses,
                fuse_dtype=jnp.bfloat16):
    k1, k2, k3 = jax.random.split(key, 3)
    return {
        "w_s2_T": (jax.random.normal(k1, (nfilters_embed, c_s2), jnp.float32)
                   * 0.1).astype(fuse_dtype),
        "w_s1_T": (jax.random.normal(k2, (nfilters_embed, c_s1), jnp.float32)
                   * 0.1).astype(fuse_dtype),
        "b_fuse": jnp.zeros((nfilters_embed, 1), jnp.float32),
        "w_head_T": jax.random.normal(k3, (nclasses, nfilters_embed),
                                      jnp.float32) * 0.1,
        "b_head": jnp.zeros((nclasses, 1), jnp.float32),
    }


if __name__ == "__main__":
    # Small, deterministic shapes consistent with the module's forward:
    # two 5D sensor streams (N, C, T, H, W), output (N, NClasses, H, W).
    N, C_S2, C_S1, T, H, W = 2, 4, 2, 4, 16, 16
    NFILTERS_EMBED = 32
    NCLASSES = 2

    key = jax.random.PRNGKey(0)
    k_in1, k_in2, k_par = jax.random.split(key, 3)
    input_t1 = jax.random.normal(
        k_in1, (N, C_S2, T, H, W), jnp.float32).astype(jnp.bfloat16)
    input_t2 = jax.random.normal(
        k_in2, (N, C_S1, T, H, W), jnp.float32).astype(jnp.bfloat16)
    params = init_params(k_par, C_S2, C_S1, NFILTERS_EMBED, NCLASSES,
                         fuse_dtype=jnp.bfloat16)

    out = jax.jit(ptavit3dca_dn_forward)(input_t1, input_t2, params)
    out = jax.block_until_ready(out)

    assert out.shape == (N, NCLASSES, H, W), out.shape
    assert bool(jnp.all(jnp.isfinite(out)))

    ref = reference_forward(input_t1, input_t2, params)
    assert jnp.allclose(out, ref, atol=2e-3, rtol=2e-3), float(
        jnp.max(jnp.abs(out - ref))
    )

    print("KERNEL_OK")
</pallas_src>

<mosaic_0001>
module attributes {stable_mosaic.version = 11 : i64} {
  func.func @fused_kernel(%arg0: i32, %arg1: i32, %arg2: memref<1x4x4x256xbf16, #tpu.memory_space<vmem>>, %arg3: memref<1x2x4x256xbf16, #tpu.memory_space<vmem>>, %arg4: memref<32x4xbf16, #tpu.memory_space<vmem>>, %arg5: memref<32x2xbf16, #tpu.memory_space<vmem>>, %arg6: memref<32x1xf32, #tpu.memory_space<vmem>>, %arg7: memref<2x32xf32, #tpu.memory_space<vmem>>, %arg8: memref<2x1xf32, #tpu.memory_space<vmem>>, %arg9: memref<1x2x256xf32, #tpu.memory_space<vmem>>) attributes {dimension_semantics = [#tpu.dimension_semantics<parallel>, #tpu.dimension_semantics<parallel>], iteration_bounds = array<i64: 2, 1>, scalar_prefetch = 0 : i64, scratch_operands = 0 : i64, tpu.core_type = #tpu.core_type<tc>, window_params = [{transform_indices = @transform_0, window_bounds = array<i64: 1, 4, 4, 256>}, {transform_indices = @transform_1, window_bounds = array<i64: 1, 2, 4, 256>}, {pipeline_mode = #tpu.pipeline_mode<synchronous>, transform_indices = @transform_2, window_bounds = array<i64: 32, 4>}, {pipeline_mode = #tpu.pipeline_mode<synchronous>, transform_indices = @transform_3, window_bounds = array<i64: 32, 2>}, {pipeline_mode = #tpu.pipeline_mode<synchronous>, transform_indices = @transform_4, window_bounds = array<i64: 32, 1>}, {pipeline_mode = #tpu.pipeline_mode<synchronous>, transform_indices = @transform_5, window_bounds = array<i64: 2, 32>}, {pipeline_mode = #tpu.pipeline_mode<synchronous>, transform_indices = @transform_6, window_bounds = array<i64: 2, 1>}, {transform_indices = @transform_7, window_bounds = array<i64: 1, 2, 256>}]} {
    %c0 = arith.constant 0 : index
    %c0_0 = arith.constant 0 : index
    %0 = vector.load %arg4[%c0, %c0_0] : memref<32x4xbf16, #tpu.memory_space<vmem>>, vector<32x4xbf16>
    %c0_1 = arith.constant 0 : index
    %c0_2 = arith.constant 0 : index
    %1 = vector.load %arg5[%c0_1, %c0_2] : memref<32x2xbf16, #tpu.memory_space<vmem>>, vector<32x2xbf16>
    %c0_3 = arith.constant 0 : index
    %c0_4 = arith.constant 0 : index
    %2 = vector.load %arg6[%c0_3, %c0_4] : memref<32x1xf32, #tpu.memory_space<vmem>>, vector<32x1xf32>
    %3 = vector.shape_cast %2 : vector<32x1xf32> to vector<32x1xf32>
    %4 = vector.broadcast %3 : vector<32x1xf32> to vector<32x256xf32>
    %cst = arith.constant 0.000000e+00 : f32
    %5 = vector.broadcast %cst : f32 to vector<32x256xf32>
    %c0_5 = arith.constant 0 : index
    %c0_6 = arith.constant 0 : index
    %c0_7 = arith.constant 0 : index
    %c0_8 = arith.constant 0 : index
    %6 = vector.load %arg2[%c0_5, %c0_6, %c0_7, %c0_8] : memref<1x4x4x256xbf16, #tpu.memory_space<vmem>>, vector<1x4x1x256xbf16>
    %7 = vector.shape_cast %6 : vector<1x4x1x256xbf16> to vector<4x256xbf16>
    %cst_9 = arith.constant dense<0.000000e+00> : vector<32x256xf32>
    %8 = tpu.matmul %0, %7, %cst_9 {dimension_numbers = #tpu.dot_dimension_numbers<[1], [0], [0], [1], [0, 0, 1, 1], [], []>} : vector<32x4xbf16>, vector<4x256xbf16>, vector<32x256xf32> -> vector<32x256xf32>
    %c0_10 = arith.constant 0 : index
    %c0_11 = arith.constant 0 : index
    %c0_12 = arith.constant 0 : index
    %c0_13 = arith.constant 0 : index
    %9 = vector.load %arg3[%c0_10, %c0_11, %c0_12, %c0_13] : memref<1x2x4x256xbf16, #tpu.memory_space<vmem>>, vector<1x2x1x256xbf16>
    %10 = vector.shape_cast %9 : vector<1x2x1x256xbf16> to vector<2x256xbf16>
    %cst_14 = arith.constant dense<0.000000e+00> : vector<32x256xf32>
    %11 = tpu.matmul %1, %10, %cst_14 {dimension_numbers = #tpu.dot_dimension_numbers<[1], [0], [0], [1], [0, 0, 1, 1], [], []>} : vector<32x2xbf16>, vector<2x256xbf16>, vector<32x256xf32> -> vector<32x256xf32>
    %12 = arith.addf %8, %11 : vector<32x256xf32>
    %13 = arith.addf %12, %4 : vector<32x256xf32>
    %cst_15 = arith.constant 0.000000e+00 : f32
    %14 = vector.broadcast %cst_15 : f32 to vector<32x256xf32>
    %15 = arith.maximumf %13, %14 : vector<32x256xf32>
    %16 = arith.addf %5, %15 : vector<32x256xf32>
    %c0_16 = arith.constant 0 : index
    %c0_17 = arith.constant 0 : index
    %c1 = arith.constant 1 : index
    %c0_18 = arith.constant 0 : index
    %17 = vector.load %arg2[%c0_16, %c0_17, %c1, %c0_18] : memref<1x4x4x256xbf16, #tpu.memory_space<vmem>>, vector<1x4x1x256xbf16>
    %18 = vector.shape_cast %17 : vector<1x4x1x256xbf16> to vector<4x256xbf16>
    %cst_19 = arith.constant dense<0.000000e+00> : vector<32x256xf32>
    %19 = tpu.matmul %0, %18, %cst_19 {dimension_numbers = #tpu.dot_dimension_numbers<[1], [0], [0], [1], [0, 0, 1, 1], [], []>} : vector<32x4xbf16>, vector<4x256xbf16>, vector<32x256xf32> -> vector<32x256xf32>
    %c0_20 = arith.constant 0 : index
    %c0_21 = arith.constant 0 : index
    %c1_22 = arith.constant 1 : index
    %c0_23 = arith.constant 0 : index
    %20 = vector.load %arg3[%c0_20, %c0_21, %c1_22, %c0_23] : memref<1x2x4x256xbf16, #tpu.memory_space<vmem>>, vector<1x2x1x256xbf16>
    %21 = vector.shape_cast %20 : vector<1x2x1x256xbf16> to vector<2x256xbf16>
    %cst_24 = arith.constant dense<0.000000e+00> : vector<32x256xf32>
    %22 = tpu.matmul %1, %21, %cst_24 {dimension_numbers = #tpu.dot_dimension_numbers<[1], [0], [0], [1], [0, 0, 1, 1], [], []>} : vector<32x2xbf16>, vector<2x256xbf16>, vector<32x256xf32> -> vector<32x256xf32>
    %23 = arith.addf %19, %22 : vector<32x256xf32>
    %24 = arith.addf %23, %4 : vector<32x256xf32>
    %cst_25 = arith.constant 0.000000e+00 : f32
    %25 = vector.broadcast %cst_25 : f32 to vector<32x256xf32>
    %26 = arith.maximumf %24, %25 : vector<32x256xf32>
    %27 = arith.addf %16, %26 : vector<32x256xf32>
    %c0_26 = arith.constant 0 : index
    %c0_27 = arith.constant 0 : index
    %c2 = arith.constant 2 : index
    %c0_28 = arith.constant 0 : index
    %28 = vector.load %arg2[%c0_26, %c0_27, %c2, %c0_28] : memref<1x4x4x256xbf16, #tpu.memory_space<vmem>>, vector<1x4x1x256xbf16>
    %29 = vector.shape_cast %28 : vector<1x4x1x256xbf16> to vector<4x256xbf16>
    %cst_29 = arith.constant dense<0.000000e+00> : vector<32x256xf32>
    %30 = tpu.matmul %0, %29, %cst_29 {dimension_numbers = #tpu.dot_dimension_numbers<[1], [0], [0], [1], [0, 0, 1, 1], [], []>} : vector<32x4xbf16>, vector<4x256xbf16>, vector<32x256xf32> -> vector<32x256xf32>
    %c0_30 = arith.constant 0 : index
    %c0_31 = arith.constant 0 : index
    %c2_32 = arith.constant 2 : index
    %c0_33 = arith.constant 0 : index
    %31 = vector.load %arg3[%c0_30, %c0_31, %c2_32, %c0_33] : memref<1x2x4x256xbf16, #tpu.memory_space<vmem>>, vector<1x2x1x256xbf16>
    %32 = vector.shape_cast %31 : vector<1x2x1x256xbf16> to vector<2x256xbf16>
    %cst_34 = arith.constant dense<0.000000e+00> : vector<32x256xf32>
    %33 = tpu.matmul %1, %32, %cst_34 {dimension_numbers = #tpu.dot_dimension_numbers<[1], [0], [0], [1], [0, 0, 1, 1], [], []>} : vector<32x2xbf16>, vector<2x256xbf16>, vector<32x256xf32> -> vector<32x256xf32>
    %34 = arith.addf %30, %33 : vector<32x256xf32>
    %35 = arith.addf %34, %4 : vector<32x256xf32>
    %cst_35 = arith.constant 0.000000e+00 : f32
    %36 = vector.broadcast %cst_35 : f32 to vector<32x256xf32>
    %37 = arith.maximumf %35, %36 : vector<32x256xf32>
    %38 = arith.addf %27, %37 : vector<32x256xf32>
    %c0_36 = arith.constant 0 : index
    %c0_37 = arith.constant 0 : index
    %c3 = arith.constant 3 : index
    %c0_38 = arith.constant 0 : index
    %39 = vector.load %arg2[%c0_36, %c0_37, %c3, %c0_38] : memref<1x4x4x256xbf16, #tpu.memory_space<vmem>>, vector<1x4x1x256xbf16>
    %40 = vector.shape_cast %39 : vector<1x4x1x256xbf16> to vector<4x256xbf16>
    %cst_39 = arith.constant dense<0.000000e+00> : vector<32x256xf32>
    %41 = tpu.matmul %0, %40, %cst_39 {dimension_numbers = #tpu.dot_dimension_numbers<[1], [0], [0], [1], [0, 0, 1, 1], [], []>} : vector<32x4xbf16>, vector<4x256xbf16>, vector<32x256xf32> -> vector<32x256xf32>
    %c0_40 = arith.constant 0 : index
    %c0_41 = arith.constant 0 : index
    %c3_42 = arith.constant 3 : index
    %c0_43 = arith.constant 0 : index
    %42 = vector.load %arg3[%c0_40, %c0_41, %c3_42, %c0_43] : memref<1x2x4x256xbf16, #tpu.memory_space<vmem>>, vector<1x2x1x256xbf16>
    %43 = vector.shape_cast %42 : vector<1x2x1x256xbf16> to vector<2x256xbf16>
    %cst_44 = arith.constant dense<0.000000e+00> : vector<32x256xf32>
    %44 = tpu.matmul %1, %43, %cst_44 {dimension_numbers = #tpu.dot_dimension_numbers<[1], [0], [0], [1], [0, 0, 1, 1], [], []>} : vector<32x2xbf16>, vector<2x256xbf16>, vector<32x256xf32> -> vector<32x256xf32>
    %45 = arith.addf %41, %44 : vector<32x256xf32>
    %46 = arith.addf %45, %4 : vector<32x256xf32>
    %cst_45 = arith.constant 0.000000e+00 : f32
    %47 = vector.broadcast %cst_45 : f32 to vector<32x256xf32>
    %48 = arith.maximumf %46, %47 : vector<32x256xf32>
    %49 = arith.addf %38, %48 : vector<32x256xf32>
    %c0_46 = arith.constant 0 : index
    %c0_47 = arith.constant 0 : index
    %50 = vector.load %arg7[%c0_46, %c0_47] : memref<2x32xf32, #tpu.memory_space<vmem>>, vector<2x32xf32>
    %cst_48 = arith.constant dense<0.000000e+00> : vector<2x256xf32>
    %51 = tpu.matmul %50, %49, %cst_48 {dimension_numbers = #tpu.dot_dimension_numbers<[1], [0], [0], [1], [0, 0, 1, 1], [], []>} : vector<2x32xf32>, vector<32x256xf32>, vector<2x256xf32> -> vector<2x256xf32>
    %c0_49 = arith.constant 0 : index
    %c0_50 = arith.constant 0 : index
    %52 = vector.load %arg8[%c0_49, %c0_50] : memref<2x1xf32, #tpu.memory_space<vmem>>, vector<2x1xf32>
    %53 = vector.broadcast %52 : vector<2x1xf32> to vector<2x256xf32>
    %54 = arith.addf %51, %53 : vector<2x256xf32>
    %55 = arith.negf %54 : vector<2x256xf32>
    %56 = math.exp %55 : vector<2x256xf32>
    %cst_51 = arith.constant 1.000000e+00 : f32
    %57 = vector.broadcast %cst_51 : f32 to vector<2x256xf32>
    %58 = arith.addf %57, %56 : vector<2x256xf32>
    %59 = arith.divf %57, %58 : vector<2x256xf32>
    %c0_52 = arith.constant 0 : index
    %c0_53 = arith.constant 0 : index
    %c0_54 = arith.constant 0 : index
    %60 = vector.load %arg9[%c0_52, %c0_53, %c0_54] : memref<1x2x256xf32, #tpu.memory_space<vmem>>, vector<1x2x256xf32>
    %61 = vector.shape_cast %60 : vector<1x2x256xf32> to vector<2x256xf32>
    %62 = vector.shape_cast %59 : vector<2x256xf32> to vector<1x2x256xf32>
    tpu.vector_store %arg9[%c0_52, %c0_53, %c0_54], %62 {strides = array<i32>} : memref<1x2x256xf32, #tpu.memory_space<vmem>>, vector<1x2x256xf32>,
    return
  }
  func.func @transform_0(%arg0: i32, %arg1: i32) -> (i32, i32, i32, i32) {
    %c0_i32 = arith.constant 0 : i32
    %c0_i32_0 = arith.constant 0 : i32
    %c0_i32_1 = arith.constant 0 : i32
    return %arg0, %c0_i32, %c0_i32_0, %arg1 : i32, i32, i32, i32
  }
  func.func @transform_1(%arg0: i32, %arg1: i32) -> (i32, i32, i32, i32) {
    %c0_i32 = arith.constant 0 : i32
    %c0_i32_0 = arith.constant 0 : i32
    %c0_i32_1 = arith.constant 0 : i32
    return %arg0, %c0_i32, %c0_i32_0, %arg1 : i32, i32, i32, i32
  }
  func.func @transform_2(%arg0: i32, %arg1: i32) -> (i32, i32) {
    %c0_i32 = arith.constant 0 : i32
    %c0_i32_0 = arith.constant 0 : i32
    %c0_i32_1 = arith.constant 0 : i32
    return %c0_i32, %c0_i32_0 : i32, i32
  }
  func.func @transform_3(%arg0: i32, %arg1: i32) -> (i32, i32) {
    %c0_i32 = arith.constant 0 : i32
    %c0_i32_0 = arith.constant 0 : i32
    %c0_i32_1 = arith.constant 0 : i32
    return %c0_i32, %c0_i32_0 : i32, i32
  }
  func.func @transform_4(%arg0: i32, %arg1: i32) -> (i32, i32) {
    %c0_i32 = arith.constant 0 : i32
    %c0_i32_0 = arith.constant 0 : i32
    %c0_i32_1 = arith.constant 0 : i32
    return %c0_i32, %c0_i32_0 : i32, i32
  }
  func.func @transform_5(%arg0: i32, %arg1: i32) -> (i32, i32) {
    %c0_i32 = arith.constant 0 : i32
    %c0_i32_0 = arith.constant 0 : i32
    %c0_i32_1 = arith.constant 0 : i32
    return %c0_i32, %c0_i32_0 : i32, i32
  }
  func.func @transform_6(%arg0: i32, %arg1: i32) -> (i32, i32) {
    %c0_i32 = arith.constant 0 : i32
    %c0_i32_0 = arith.constant 0 : i32
    %c0_i32_1 = arith.constant 0 : i32
    return %c0_i32, %c0_i32_0 : i32, i32
  }
  func.func @transform_7(%arg0: i32, %arg1: i32) -> (i32, i32, i32) {
    %c0_i32 = arith.constant 0 : i32
    %c0_i32_0 = arith.constant 0 : i32
    return %arg0, %c0_i32, %arg1 : i32, i32, i32
  }
}

</mosaic_0001>

<llo_original>
// kernel: ptavit3dca_dn_forward.1
$region0: #{ptavit3dca_dn_forward.1}
  #allocation0 [shape = 'u32[]', space=smem, size = 0x4, offset = 0x4, fixed_abs, tag = 'smem constant byte address 0x4 - core index']
  #allocation1 [shape = 'u32[144,128]{1,0:T(1,128)}', space=vmem, size = 0x12000, scoped, tag = 'internal scratch']
  %s0 = inlined_call_operand.vmem [shape: bf16[2,4,4,256], index: 0, kind: input, shape index: {}]
  %s1 = inlined_call_operand.vmem [shape: bf16[2,2,4,256], index: 1, kind: input, shape index: {}]
  %s2 = inlined_call_operand.vmem [shape: bf16[32,4], index: 2, kind: input, shape index: {}]
  %s3 = inlined_call_operand.vmem [shape: bf16[32,2], index: 3, kind: input, shape index: {}]
  %s4 = inlined_call_operand.vmem [shape: f32[32,1], index: 4, kind: input, shape index: {}]
  %s5 = inlined_call_operand.vmem [shape: f32[2,32], index: 5, kind: input, shape index: {}]
  %s6 = inlined_call_operand.vmem [shape: f32[2,1], index: 6, kind: input, shape index: {}]
  %s7 = inlined_call_operand.vmem [shape: f32[2,2,256], index: 7, kind: output, shape index: {}]
  %s8 = sld [smem:[#allocation0]]
  $region61: #{ptavit3dca_dn_forward.1} parent=0
    _
  %s10 = ssub.s32 1, %s8
  %s11 = scalar_select 0, %s10, %s8
  loop: start=0, step=1, limit=4
  $region2: #{ptavit3dca_dn_forward.1} parent=0 // loop_pre_header
    _
  $region3: #{ptavit3dca_dn_forward.1} parent=0 // loop_header
    %s13 = sphi 0, %s17
    %p14 = scmp.ge.s32.totalorder %s13, 4
    %s20 = sphi 0, %s32
    %s21 = sphi 0, %s28
    %s22 = sphi 0, %s20
    %s23 = sphi 0, %s21
    %s24 = sphi 0, %s22
    %s25 = sphi 0, %s23
    %s37 = sphi 0, %s39
    %s40 = sphi 0, %s37
    %s41 = sphi 0, %s40
    %s57 = sphi 0, %s41
    %s65 = sphi 0, %s67
    %s68 = sphi 0, %s65
    %s69 = sphi 0, %s68
    %s85 = sphi 0, %s69
    %s89 = sphi 0, %s89
    %s91 = sphi 0, %s89
    %s92 = sphi 0, %s91
    %s106 = sphi 0, %s92
    %s110 = sphi 0, %s110
    %s112 = sphi 0, %s110
    %s113 = sphi 0, %s112
    %s127 = sphi 0, %s113
    %s131 = sphi 0, %s131
    %s133 = sphi 0, %s131
    %s134 = sphi 0, %s133
    %s148 = sphi 0, %s134
    %s152 = sphi 0, %s152
    %s154 = sphi 0, %s152
    %s155 = sphi 0, %s154
    %s169 = sphi 0, %s155
    %s173 = sphi 0, %s173
    %s175 = sphi 0, %s173
    %s176 = sphi 0, %s175
    %s190 = sphi 0, %s176
    %s198 = sphi 0, %s200
    %s201 = sphi 0, %s198
    %s202 = sphi 0, %s201
    %s218 = sphi 0, %s202
  $region4: #{ptavit3dca_dn_forward.1} parent=0 // loop_header_branch
    %16 = sbr.rel (%p14) target = $region8
  $region5: #{ptavit3dca_dn_forward.1} parent=0 // loop_body
    %s18 = ssub.s32 %s13, 1
    %s19 = ssub.s32 %s13, 2
    %s26 = sadd.s32 1, %s21
    %p27 = scmp.ge.s32.totalorder %s26, 1
    %s28 = scalar_select %p27, 0, %s26
    %s29 = sadd.s32 1, %s20
    %s30 = scalar_select %p27, %s29, %s20
    %p31 = scmp.ge.s32.totalorder %s30, 2
    %s32 = scalar_select %p31, 0, %s30
    %s33 = ssub.s32 %s20, %s32
    %s34 = ssub.s32 %s21, %s28
    %s35 = sor.u32 %s33, %s34
    %p36 = scmp.eq.s32.totalorder %s35, 0
    %s38 = sadd.s32 %s37, 1
    %s39 = scalar_select %p36, %s37, %s38
    %p42 = pneg %p36
    %p43 = scmp.eq.s32.totalorder %s13, 1
    %p44 = por %p42, %p43
    %p45 = scmp.ne.s32.totalorder %s37, %s40
    %p46 = scmp.eq.s32.totalorder %s13, 0
    %p47 = por %p45, %p46
    %p48 = scmp.ne.s32.totalorder %s37, %s40
    %p49 = scmp.eq.s32.totalorder %s18, 1
    %p50 = por %p48, %p49
    %p51 = scmp.ne.s32.totalorder %s40, %s41
    %p52 = scmp.eq.s32.totalorder %s18, 0
    %p53 = por %p51, %p52
    %p54 = scmp.ne.s32.totalorder %s40, %s41
    %p55 = scmp.eq.s32.totalorder %s19, 1
    %p56 = por %p54, %p55
    %p58 = scmp.ne.s32.totalorder %s41, %s57
    %p59 = scmp.eq.s32.totalorder %s19, 0
    %p60 = por %p58, %p59
    %s61 = ssub.s32 %s20, %s32
    %s62 = ssub.s32 %s21, %s28
    %s63 = sor.u32 %s61, %s62
    %p64 = scmp.eq.s32.totalorder %s63, 0
    %s66 = sadd.s32 %s65, 1
    %s67 = scalar_select %p64, %s65, %s66
    %p70 = pneg %p64
    %p71 = scmp.eq.s32.totalorder %s13, 1
    %p72 = por %p70, %p71
    %p73 = scmp.ne.s32.totalorder %s65, %s68
    %p74 = scmp.eq.s32.totalorder %s13, 0
    %p75 = por %p73, %p74
    %p76 = scmp.ne.s32.totalorder %s65, %s68
    %p77 = scmp.eq.s32.totalorder %s18, 1
    %p78 = por %p76, %p77
    %p79 = scmp.ne.s32.totalorder %s68, %s69
    %p80 = scmp.eq.s32.totalorder %s18, 0
    %p81 = por %p79, %p80
    %p82 = scmp.ne.s32.totalorder %s68, %s69
    %p83 = scmp.eq.s32.totalorder %s19, 1
    %p84 = por %p82, %p83
    %p86 = scmp.ne.s32.totalorder %s69, %s85
    %p87 = scmp.eq.s32.totalorder %s19, 0
    %p88 = por %p86, %p87
    %s90 = sadd.s32 %s89, 1
    %p93 = scmp.eq.s32.totalorder %s13, 1
    %p94 = scmp.ne.s32.totalorder %s89, %s91
    %p95 = scmp.eq.s32.totalorder %s13, 0
    %p96 = por %p94, %p95
    %p97 = scmp.ne.s32.totalorder %s89, %s91
    %p98 = scmp.eq.s32.totalorder %s18, 1
    %p99 = por %p97, %p98
    %p100 = scmp.ne.s32.totalorder %s91, %s92
    %p101 = scmp.eq.s32.totalorder %s18, 0
    %p102 = por %p100, %p101
    %p103 = scmp.ne.s32.totalorder %s91, %s92
    %p104 = scmp.eq.s32.totalorder %s19, 1
    %p105 = por %p103, %p104
    %p107 = scmp.ne.s32.totalorder %s92, %s106
    %p108 = scmp.eq.s32.totalorder %s19, 0
    %p109 = por %p107, %p108
    %s111 = sadd.s32 %s110, 1
    %p114 = scmp.eq.s32.totalorder %s13, 1
    %p115 = scmp.ne.s32.totalorder %s110, %s112
    %p116 = scmp.eq.s32.totalorder %s13, 0
    %p117 = por %p115, %p116
    %p118 = scmp.ne.s32.totalorder %s110, %s112
    %p119 = scmp.eq.s32.totalorder %s18, 1
    %p120 = por %p118, %p119
    %p121 = scmp.ne.s32.totalorder %s112, %s113
    %p122 = scmp.eq.s32.totalorder %s18, 0
    %p123 = por %p121, %p122
    %p124 = scmp.ne.s32.totalorder %s112, %s113
    %p125 = scmp.eq.s32.totalorder %s19, 1
    %p126 = por %p124, %p125
    %p128 = scmp.ne.s32.totalorder %s113, %s127
    %p129 = scmp.eq.s32.totalorder %s19, 0
    %p130 = por %p128, %p129
    %s132 = sadd.s32 %s131, 1
    %p135 = scmp.eq.s32.totalorder %s13, 1
    %p136 = scmp.ne.s32.totalorder %s131, %s133
    %p137 = scmp.eq.s32.totalorder %s13, 0
    %p138 = por %p136, %p137
    %p139 = scmp.ne.s32.totalorder %s131, %s133
    %p140 = scmp.eq.s32.totalorder %s18, 1
    %p141 = por %p139, %p140
    %p142 = scmp.ne.s32.totalorder %s133, %s134
    %p143 = scmp.eq.s32.totalorder %s18, 0
    %p144 = por %p142, %p143
    %p145 = scmp.ne.s32.totalorder %s133, %s134
    %p146 = scmp.eq.s32.totalorder %s19, 1
    %p147 = por %p145, %p146
    %p149 = scmp.ne.s32.totalorder %s134, %s148
    %p150 = scmp.eq.s32.totalorder %s19, 0
    %p151 = por %p149, %p150
    %s153 = sadd.s32 %s152, 1
    %p156 = scmp.eq.s32.totalorder %s13, 1
    %p157 = scmp.ne.s32.totalorder %s152, %s154
    %p158 = scmp.eq.s32.totalorder %s13, 0
    %p159 = por %p157, %p158
    %p160 = scmp.ne.s32.totalorder %s152, %s154
    %p161 = scmp.eq.s32.totalorder %s18, 1
    %p162 = por %p160, %p161
    %p163 = scmp.ne.s32.totalorder %s154, %s155
    %p164 = scmp.eq.s32.totalorder %s18, 0
    %p165 = por %p163, %p164
    %p166 = scmp.ne.s32.totalorder %s154, %s155
    %p167 = scmp.eq.s32.totalorder %s19, 1
    %p168 = por %p166, %p167
    %p170 = scmp.ne.s32.totalorder %s155, %s169
    %p171 = scmp.eq.s32.totalorder %s19, 0
    %p172 = por %p170, %p171
    %s174 = sadd.s32 %s173, 1
    %p177 = scmp.eq.s32.totalorder %s13, 1
    %p178 = scmp.ne.s32.totalorder %s173, %s175
    %p179 = scmp.eq.s32.totalorder %s13, 0
    %p180 = por %p178, %p179
    %p181 = scmp.ne.s32.totalorder %s173, %s175
    %p182 = scmp.eq.s32.totalorder %s18, 1
    %p183 = por %p181, %p182
    %p184 = scmp.ne.s32.totalorder %s175, %s176
    %p185 = scmp.eq.s32.totalorder %s18, 0
    %p186 = por %p184, %p185
    %p187 = scmp.ne.s32.totalorder %s175, %s176
    %p188 = scmp.eq.s32.totalorder %s19, 1
    %p189 = por %p187, %p188
    %p191 = scmp.ne.s32.totalorder %s176, %s190
    %p192 = scmp.eq.s32.totalorder %s19, 0
    %p193 = por %p191, %p192
    %s194 = ssub.s32 %s20, %s32
    %s195 = ssub.s32 %s21, %s28
    %s196 = sor.u32 %s194, %s195
    %p197 = scmp.eq.s32.totalorder %s196, 0
    %s199 = sadd.s32 %s198, 1
    %s200 = scalar_select %p197, %s198, %s199
    %p203 = pneg %p197
    %p204 = scmp.eq.s32.totalorder %s13, 1
    %p205 = por %p203, %p204
    %p206 = scmp.ne.s32.totalorder %s198, %s201
    %p207 = scmp.eq.s32.totalorder %s13, 0
    %p208 = por %p206, %p207
    %p209 = scmp.ne.s32.totalorder %s198, %s201
    %p210 = scmp.eq.s32.totalorder %s18, 1
    %p211 = por %p209, %p210
    %p212 = scmp.ne.s32.totalorder %s201, %s202
    %p213 = scmp.eq.s32.totalorder %s18, 0
    %p214 = por %p212, %p213
    %p215 = scmp.ne.s32.totalorder %s201, %s202
    %p216 = scmp.eq.s32.totalorder %s19, 1
    %p217 = por %p215, %p216
    %p219 = scmp.ne.s32.totalorder %s202, %s218
    %p220 = scmp.eq.s32.totalorder %s19, 0
    %p221 = por %p219, %p220
    %p222 = scmp.le.s32.totalorder 1, %s13
    %p223 = scmp.lt.s32.totalorder %s13, 3
    %p224 = pnand %p222, %p223
    %p225 = pneg %p224
    // Predicated region
    $region9: #{ptavit3dca_dn_forward.1} parent=5 // pred_check
      _
    $region10: #{ptavit3dca_dn_forward.1} parent=5 // pred_check_branch
      %227 = sbr.rel (%p224) target = $region12
    $region11: #{ptavit3dca_dn_forward.1} parent=5 // pred_region
      %s228 = ssub.s32 %s13, 1
      // Predicated region
      $region13: #{ptavit3dca_dn_forward.1} parent=11 // pred_check
        %p229 = pneg %p102
      $region14: #{ptavit3dca_dn_forward.1} parent=11 // pred_check_branch
        %231 = sbr.rel (%p229) target = $region16
      $region15: #{ptavit3dca_dn_forward.1} parent=11 // pred_region
        _
      $region16: #{ptavit3dca_dn_forward.1} parent=11 // pred_fallthru
        _
      // Predicated region
      $region17: #{ptavit3dca_dn_forward.1} parent=11 // pred_check
        %p232 = pneg %p123
      $region18: #{ptavit3dca_dn_forward.1} parent=11 // pred_check_branch
        %234 = sbr.rel (%p232) target = $region20
      $region19: #{ptavit3dca_dn_forward.1} parent=11 // pred_region
        _
      $region20: #{ptavit3dca_dn_forward.1} parent=11 // pred_fallthru
        _
      // Predicated region
      $region21: #{ptavit3dca_dn_forward.1} parent=11 // pred_check
        %p235 = pneg %p144
      $region22: #{ptavit3dca_dn_forward.1} parent=11 // pred_check_branch
        %237 = sbr.rel (%p235) target = $region24
      $region23: #{ptavit3dca_dn_forward.1} parent=11 // pred_region
        _
      $region24: #{ptavit3dca_dn_forward.1} parent=11 // pred_fallthru
        _
      // Predicated region
      $region25: #{ptavit3dca_dn_forward.1} parent=11 // pred_check
        %p238 = pneg %p165
      $region26: #{ptavit3dca_dn_forward.1} parent=11 // pred_check_branch
        %240 = sbr.rel (%p238) target = $region28
      $region27: #{ptavit3dca_dn_forward.1} parent=11 // pred_region
        _
      $region28: #{ptavit3dca_dn_forward.1} parent=11 // pred_fallthru
        _
      // Predicated region
      $region29: #{ptavit3dca_dn_forward.1} parent=11 // pred_check
        %p241 = pneg %p186
      $region30: #{ptavit3dca_dn_forward.1} parent=11 // pred_check_branch
        %243 = sbr.rel (%p241) target = $region32
      $region31: #{ptavit3dca_dn_forward.1} parent=11 // pred_region
        _
      $region32: #{ptavit3dca_dn_forward.1} parent=11 // pred_fallthru
        _
    $region12: #{ptavit3dca_dn_forward.1} parent=5 // pred_fallthru
      _
    %p244 = scmp.lt.s32.totalorder %s13, 2
    // Predicated region
    $region33: #{ptavit3dca_dn_forward.1} parent=5 // pred_check
      %p245 = pneg %p244
    $region34: #{ptavit3dca_dn_forward.1} parent=5 // pred_check_branch
      %247 = sbr.rel (%p245) target = $region36
    $region35: #{ptavit3dca_dn_forward.1} parent=5 // pred_region
      // Predicated region
      $region37: #{ptavit3dca_dn_forward.1} parent=35 // pred_check
        %p248 = pneg %p47
      $region38: #{ptavit3dca_dn_forward.1} parent=35 // pred_check_branch
        %250 = sbr.rel (%p248) target = $region40
      $region39: #{ptavit3dca_dn_forward.1} parent=35 // pred_region
        %s251 = smul.u32 2, %s21
        %p252 = scmp.lt.s32.totalorder %s20, 1
        %s253 = scalar_select %p252, %s20, 1
        %p254 = scmp.lt.s32.totalorder %s251, 1
        %s255 = scalar_select %p254, %s251, 1
        %s256 = smul.addr %s253, 8
        %s257 = sadd.s32 %s255, %s256
        %s258 = smul.addr %s257, 2
        %s259 = scalar_lea.vmem %s0, %s258
        %s260 = smul.u32 2, %s21
      $region40: #{ptavit3dca_dn_forward.1} parent=35 // pred_fallthru
        _
      // Predicated region
      $region41: #{ptavit3dca_dn_forward.1} parent=35 // pred_check
        %p261 = pneg %p75
      $region42: #{ptavit3dca_dn_forward.1} parent=35 // pred_check_branch
        %263 = sbr.rel (%p261) target = $region44
      $region43: #{ptavit3dca_dn_forward.1} parent=35 // pred_region
        %s264 = smul.u32 2, %s21
        %p265 = scmp.lt.s32.totalorder %s20, 1
        %s266 = scalar_select %p265, %s20, 1
        %p267 = scmp.lt.s32.totalorder %s264, 1
        %s268 = scalar_select %p267, %s264, 1
        %s269 = smul.addr %s266, 4
        %s270 = sadd.s32 %s268, %s269
        %s271 = smul.addr %s270, 2
        %s272 = scalar_lea.vmem %s1, %s271
        %s273 = smul.u32 2, %s21
      $region44: #{ptavit3dca_dn_forward.1} parent=35 // pred_fallthru
        _
    $region36: #{ptavit3dca_dn_forward.1} parent=5 // pred_fallthru
      _
    %p274 = scmp.le.s32.totalorder 1, %s13
    %p275 = scmp.lt.s32.totalorder %s13, 3
    %p276 = pnand %p274, %p275
    %p277 = pneg %p276
    // Predicated region
    $region45: #{ptavit3dca_dn_forward.1} parent=5 // pred_check
      _
    $region46: #{ptavit3dca_dn_forward.1} parent=5 // pred_check_branch
      %279 = sbr.rel (%p276) target = $region48
    $region47: #{ptavit3dca_dn_forward.1} parent=5 // pred_region
      %s280 = ssub.s32 %s13, 1
      %s281 = smul.u32 2, %s23
      %p282 = scmp.lt.s32.totalorder %s22, 1
      %s283 = scalar_select %p282, %s22, 1
      %p284 = scmp.lt.s32.totalorder %s281, 1
      %s285 = scalar_select %p284, %s281, 1
      %s286 = smul.addr %s283, 8
      %s287 = sadd.s32 %s285, %s286
      %s288 = smul.addr %s287, 2
      %s289 = scalar_lea.vmem %s0, %s288
      %p290 = pneg %p53
      %p291 = pneg %p50
      %s292 = smul.u32 2, %s23
      %p293 = scmp.lt.s32.totalorder %s22, 1
      %s294 = scalar_select %p293, %s22, 1
      %p295 = scmp.lt.s32.totalorder %s292, 1
      %s296 = scalar_select %p295, %s292, 1
      %s297 = smul.addr %s294, 4
      %s298 = sadd.s32 %s296, %s297
      %s299 = smul.addr %s298, 2
      %s300 = scalar_lea.vmem %s1, %s299
      %p301 = pneg %p81
      %p302 = pneg %p78
      %p303 = pneg %p102
      %p304 = pneg %p99
      %p305 = pneg %p123
      %p306 = pneg %p120
      %p307 = pneg %p144
      %p308 = pneg %p141
      %p309 = pneg %p165
      %p310 = pneg %p162
      %p311 = pneg %p186
      %p312 = pneg %p183
      %p313 = pneg %p214
      %p314 = pneg %p211
      %s315 = smul.u32 2, %s23
      %p316 = scmp.lt.s32.totalorder %s22, 1
      %s317 = scalar_select %p316, %s22, 1
      %p318 = scmp.lt.s32.totalorder %s315, 1
      %s319 = scalar_select %p318, %s315, 1
      %s320 = smul.addr %s317, 2
      %s321 = sadd.s32 %s319, %s320
      %s322 = smul.addr %s321, 2
      %s323 = scalar_lea.vmem %s7, %s322
      %s324 = smul.u32 2, %s23
      %p325 = scmp.lt.s32.totalorder %s22, 1
      %s326 = scalar_select %p325, %s22, 1
      %p327 = scmp.lt.s32.totalorder %s324, 1
      %s328 = scalar_select %p327, %s324, 1
      %s329 = smul.addr %s326, 8
      %s330 = sadd.s32 %s328, %s329
      %s331 = smul.addr %s330, 2
      %s332 = scalar_lea.vmem %s0, %s331
      %s333 = smul.u32 2, %s23
      %s334 = smul.u32 2, %s23
      %p335 = scmp.lt.s32.totalorder %s22, 1
      %s336 = scalar_select %p335, %s22, 1
      %p337 = scmp.lt.s32.totalorder %s334, 1
      %s338 = scalar_select %p337, %s334, 1
      %s339 = smul.addr %s336, 4
      %s340 = sadd.s32 %s338, %s339
      %s341 = smul.addr %s340, 2
      %s342 = scalar_lea.vmem %s1, %s341
      %s343 = smul.u32 2, %s23
      %s344 = smul.u32 2, %s23
      %p345 = scmp.lt.s32.totalorder %s22, 1
      %s346 = scalar_select %p345, %s22, 1
      %p347 = scmp.lt.s32.totalorder %s344, 1
      %s348 = scalar_select %p347, %s344, 1
      %s349 = smul.addr %s346, 2
      %s350 = sadd.s32 %s348, %s349
      %s351 = smul.addr %s350, 2
      %s352 = scalar_lea.vmem %s7, %s351
      %s353 = smul.u32 2, %s23
      %v355 = vld [vmem:[%s2] sm:$0xf]
      %v356 = vld [vmem:[%s2 + $0x4] sm:$0xf]
      %v357 = vld [vmem:[%s2 + $0x8] sm:$0xf]
      %v358 = vld [vmem:[%s2 + $0xc] sm:$0xf]
      %v359 = vld [vmem:[%s3] sm:$0xf]
      %v360 = vld [vmem:[%s3 + $0x4] sm:$0xf]
      %v361 = vld [vmem:[%s3 + $0x8] sm:$0xf]
      %v362 = vld [vmem:[%s3 + $0xc] sm:$0xf]
      %v363 = vld [vmem:[%s4] sm:$0xff]
      %v364 = vld [vmem:[%s4 + $0x8] sm:$0xff]
      %v365 = vld [vmem:[%s4 + $0x10] sm:$0xff]
      %v366 = vld [vmem:[%s4 + $0x18] sm:$0xff]
      %368 = vset.pattern.permute.xlu0 0
      %369 = vperm.xlu0 %368, %v363
      %v370 = vpop.permute.xlu0 %369
      %373 = vset.pattern.permute.xlu0 0
      %374 = vperm.xlu0 %373, %v364
      %v375 = vpop.permute.xlu0 %374
      %378 = vset.pattern.permute.xlu0 0
      %379 = vperm.xlu0 %378, %v365
      %v380 = vpop.permute.xlu0 %379
      %383 = vset.pattern.permute.xlu0 0
      %384 = vperm.xlu0 %383, %v366
      %v385 = vpop.permute.xlu0 %384
      %v387 = vld [vmem:[%s332] sm:$0x5]
      %v388 = vld [vmem:[%s332 + $0x4] sm:$0x5]
      %v389 = vld [vmem:[%s332 + $0x8] sm:$0x5]
      %v390 = vld [vmem:[%s332 + $0xc] sm:$0x5]
      %v391 = vld [vmem:[%s342] sm:$0x5]
      %v392 = vld [vmem:[%s342 + $0x4] sm:$0x5]
      %v397 = vunpack.c.l.b16 %v359
      %v398 = vunpack.c.l.b16 %v360
      %v399 = vunpack.c.l.b16 %v361
      %v400 = vunpack.c.l.b16 %v362
      %v401 = vpack.c.b16 %v398, %v397
      %v402 = vpack.c.b16 %v400, %v399
      %v406 = vunpack.c.l.s4 1983009808
      %v407 = vunpack.c.0.s8 %v406
      %v408 = vlaneseq
      %v409 = vshrl.u32 %v408, 7
      %v410 = vsub.s32 %v407, %v409
      %v411 = vrot.slane %v391, %v410
      %v412 = vcombine.high %v411, %v411
      %v414 = vunpack.c.l.s4 1983009808
      %v415 = vunpack.c.0.s8 %v414
      %v416 = vlaneseq
      %v417 = vshrl.u32 %v416, 7
      %v418 = vsub.s32 %v415, %v417
      %v419 = vrot.slane %v392, %v418
      %v420 = vcombine.high %v419, %v419
      %v421 = vunpack.c.l.b16 %v411
      %v422 = vunpack.c.l.b16 %v412
      %v423 = vunpack.c.l.b16 %v419
      %v424 = vunpack.c.l.b16 %v420
      %v425 = vrot.slane %v423, 7
      %vm426 = vcmask 1041409
      %v427 = vsel %vm426, %v425, %v421
      %v428 = vrot.slane %v424, 7
      %v429 = vsel %vm426, %v428, %v422
      %v430 = vpack.c.b16 %v427, %v427
      %v431 = vpack.c.b16 %v429, %v429
      %vm432 = vcmask 15360
      %v434 = vsel %vm432, %v401, 0
      %v437 = vsel %vm432, %v402, 0
      %vm439 = vcmask 1040384
      %v441 = vsel %vm439, %v430, 0
      %v444 = vsel %vm439, %v431, 0
      %446 = vmatprep.subr.bf16.mxu0 %v444
      %447 = vmatpush1.bf16.msra.mxu0 %v441
      %448 = vmatprep.subr.bf16.mxu0 0
      %449 = vmatpush1.bf16.msra.mxu0 0
      %450 = vmatprep.subr.bf16.mxu0 0
      %451 = vmatpush1.bf16.msra.mxu0 0
      %452 = vmatprep.subr.bf16.mxu0 0
      %453 = vmatpush1.bf16.msra.mxu0 0
      %454 = vmatprep.subr.bf16.mxu0 0
      %455 = vmatpush1.bf16.msra.mxu0 0
      %456 = vmatprep.subr.bf16.mxu0 0
      %457 = vmatpush1.bf16.msra.mxu0 0
      %458 = vmatprep.subr.bf16.mxu0 0
      %459 = vmatpush1.bf16.msra.mxu0 0
      %460 = vmatprep.subr.bf16.mxu0 0
      %461 = vmatpush1.bf16.msra.mxu0 0
      %462 = vmatprep.subr.bf16.mxu0 0
      %463 = vmatpush1.bf16.msra.mxu0 0
      %464 = vmatprep.subr.bf16.mxu0 0
      %465 = vmatpush1.bf16.msra.mxu0 0
      %466 = vmatprep.subr.bf16.mxu0 0
      %467 = vmatpush1.bf16.msra.mxu0 0
      %468 = vmatprep.subr.bf16.mxu0 0
      %469 = vmatpush1.bf16.msra.mxu0 0
      %470 = vmatprep.subr.bf16.mxu0 0
      %471 = vmatpush1.bf16.msra.mxu0 0
      %472 = vmatprep.subr.bf16.mxu0 0
      %473 = vmatpush1.bf16.msra.mxu0 0
      %474 = vmatprep.subr.bf16.mxu0 0
      %475 = vmatpush1.bf16.msra.mxu0 0
      %476 = vmatprep.subr.bf16.mxu0 0
      %477 = vmatpush1.bf16.msra.mxu0 0
      %478 = vmatprep.mubr.bf16.mxu0 0
      %479 = vmatmul.mubr.bf16.gmra.mrb[0].mxu0 %v434
      %v480 = vpop.f32.mrb[0].mxu0
      %v481 = vadd.f32 0.0, %v480
      %v482 = vpop.f32.mrb[0].mxu0
      %v483 = vadd.f32 0.0, %v482
      %v484 = vpop.f32.mrb[0].mxu0
      %v485 = vadd.f32 0.0, %v484
      %v486 = vpop.f32.mrb[0].mxu0
      %v487 = vadd.f32 0.0, %v486
      %488 = vmatprep.mubr.bf16.mxu0 0
      %489 = vmatmul.mubr.bf16.gmra.mrb[0].mxu0 %v437
      %v490 = vpop.f32.mrb[0].mxu0
      %v491 = vadd.f32 0.0, %v490
      %v492 = vpop.f32.mrb[0].mxu0
      %v493 = vadd.f32 0.0, %v492
      %v494 = vpop.f32.mrb[0].mxu0
      %v495 = vadd.f32 0.0, %v494
      %v496 = vpop.f32.mrb[0].mxu0
      %v497 = vadd.f32 0.0, %v496
      %498 = vdwg.mxu0
      %v503 = vunpack.c.l.b16 %v355
      %v504 = vunpack.c.l.b16 %v356
      %v505 = vunpack.c.l.b16 %v357
      %v506 = vunpack.c.l.b16 %v358
      %v507 = vpack.c.b16 %v504, %v503
      %v508 = vpack.c.b16 %v506, %v505
      %v514 = vunpack.c.l.s4 1983009808
      %v515 = vunpack.c.0.s8 %v514
      %v516 = vlaneseq
      %v517 = vshrl.u32 %v516, 7
      %v518 = vsub.s32 %v515, %v517
      %v519 = vrot.slane %v387, %v518
      %v520 = vcombine.high %v519, %v519
      %v522 = vunpack.c.l.s4 1983009808
      %v523 = vunpack.c.0.s8 %v522
      %v524 = vlaneseq
      %v525 = vshrl.u32 %v524, 7
      %v526 = vsub.s32 %v523, %v525
      %v527 = vrot.slane %v388, %v526
      %v528 = vcombine.high %v527, %v527
      %v530 = vunpack.c.l.s4 1983009808
      %v531 = vunpack.c.0.s8 %v530
      %v532 = vlaneseq
      %v533 = vshrl.u32 %v532, 7
      %v534 = vsub.s32 %v531, %v533
      %v535 = vrot.slane %v389, %v534
      %v536 = vcombine.high %v535, %v535
      %v538 = vunpack.c.l.s4 1983009808
      %v539 = vunpack.c.0.s8 %v538
      %v540 = vlaneseq
      %v541 = vshrl.u32 %v540, 7
      %v542 = vsub.s32 %v539, %v541
      %v543 = vrot.slane %v390, %v542
      %v544 = vcombine.high %v543, %v543
      %v545 = vunpack.c.l.b16 %v519
      %v546 = vunpack.c.l.b16 %v520
      %v547 = vunpack.c.l.b16 %v527
      %v548 = vunpack.c.l.b16 %v528
      %v549 = vunpack.c.l.b16 %v535
      %v550 = vunpack.c.l.b16 %v536
      %v551 = vunpack.c.l.b16 %v543
      %v552 = vunpack.c.l.b16 %v544
      %v553 = vrot.slane %v547, 7
      %v554 = vsel %vm426, %v553, %v545
      %v555 = vrot.slane %v549, 6
      %vm556 = vcmask 1042434
      %v557 = vsel %vm556, %v555, %v554
      %v558 = vrot.slane %v551, 5
      %vm559 = vcmask 1043459
      %v560 = vsel %vm559, %v558, %v557
      %v561 = vrot.slane %v548, 7
      %v562 = vsel %vm426, %v561, %v546
      %v563 = vrot.slane %v550, 6
      %v564 = vsel %vm556, %v563, %v562
      %v565 = vrot.slane %v552, 5
      %v566 = vsel %vm559, %v565, %v564
      %v567 = vpack.c.b16 %v560, %v560
      %v568 = vpack.c.b16 %v566, %v566
      %vm569 = vcmask 31744
      %v571 = vsel %vm569, %v507, 0
      %v574 = vsel %vm569, %v508, 0
      %vm576 = vcmask 1041408
      %v578 = vsel %vm576, %v567, 0
      %v581 = vsel %vm576, %v568, 0
      %583 = vmatprep.subr.bf16.mxu0 %v581
      %584 = vmatpush1.bf16.msra.mxu0 %v578
      %585 = vmatprep.subr.bf16.mxu0 0
      %586 = vmatpush1.bf16.msra.mxu0 0
      %587 = vmatprep.subr.bf16.mxu0 0
      %588 = vmatpush1.bf16.msra.mxu0 0
      %589 = vmatprep.subr.bf16.mxu0 0
      %590 = vmatpush1.bf16.msra.mxu0 0
      %591 = vmatprep.subr.bf16.mxu0 0
      %592 = vmatpush1.bf16.msra.mxu0 0
      %593 = vmatprep.subr.bf16.mxu0 0
      %594 = vmatpush1.bf16.msra.mxu0 0
      %595 = vmatprep.subr.bf16.mxu0 0
      %596 = vmatpush1.bf16.msra.mxu0 0
      %597 = vmatprep.subr.bf16.mxu0 0
      %598 = vmatpush1.bf16.msra.mxu0 0
      %599 = vmatprep.subr.bf16.mxu0 0
      %600 = vmatpush1.bf16.msra.mxu0 0
      %601 = vmatprep.subr.bf16.mxu0 0
      %602 = vmatpush1.bf16.msra.mxu0 0
      %603 = vmatprep.subr.bf16.mxu0 0
      %604 = vmatpush1.bf16.msra.mxu0 0
      %605 = vmatprep.subr.bf16.mxu0 0
      %606 = vmatpush1.bf16.msra.mxu0 0
      %607 = vmatprep.subr.bf16.mxu0 0
      %608 = vmatpush1.bf16.msra.mxu0 0
      %609 = vmatprep.subr.bf16.mxu0 0
      %610 = vmatpush1.bf16.msra.mxu0 0
      %611 = vmatprep.subr.bf16.mxu0 0
      %612 = vmatpush1.bf16.msra.mxu0 0
      %613 = vmatprep.subr.bf16.mxu0 0
      %614 = vmatpush1.bf16.msra.mxu0 0
      %615 = vmatprep.mubr.bf16.mxu0 0
      %616 = vmatmul.mubr.bf16.gmra.mrb[0].mxu0 %v571
      %v617 = vpop.f32.mrb[0].mxu0
      %v618 = vadd.f32 %v481, %v617
      %v619 = vpop.f32.mrb[0].mxu0
      %v620 = vadd.f32 %v483, %v619
      %v621 = vpop.f32.mrb[0].mxu0
      %v622 = vadd.f32 %v485, %v621
      %v623 = vpop.f32.mrb[0].mxu0
      %v624 = vadd.f32 %v487, %v623
      %625 = vmatprep.mubr.bf16.mxu0 0
      %626 = vmatmul.mubr.bf16.gmra.mrb[0].mxu0 %v574
      %v627 = vpop.f32.mrb[0].mxu0
      %v628 = vadd.f32 %v491, %v627
      %v629 = vpop.f32.mrb[0].mxu0
      %v630 = vadd.f32 %v493, %v629
      %v631 = vpop.f32.mrb[0].mxu0
      %v632 = vadd.f32 %v495, %v631
      %v633 = vpop.f32.mrb[0].mxu0
      %v634 = vadd.f32 %v497, %v633
      %635 = vdwg.mxu0
      %v636 = vadd.f32 %v618, %v370
      %v637 = vadd.f32 %v620, %v370
      %v638 = vadd.f32 %v622, %v375
      %v639 = vadd.f32 %v624, %v375
      %v640 = vadd.f32 %v628, %v380
      %v641 = vadd.f32 %v630, %v380
      %v642 = vadd.f32 %v632, %v385
      %v643 = vadd.f32 %v634, %v385
      %v644 = vmax.f32 %v636, 0.0
      %v645 = vmax.f32 %v637, 0.0
      %v646 = vmax.f32 %v638, 0.0
      %v647 = vmax.f32 %v639, 0.0
      %v648 = vmax.f32 %v640, 0.0
      %v649 = vmax.f32 %v641, 0.0
      %v650 = vmax.f32 %v642, 0.0
      %v651 = vmax.f32 %v643, 0.0
      %v652 = vadd.f32 %v644, 0.0
      %v653 = vadd.f32 %v645, 0.0
      %v654 = vadd.f32 %v646, 0.0
      %v655 = vadd.f32 %v647, 0.0
      %v656 = vadd.f32 %v648, 0.0
      %v657 = vadd.f32 %v649, 0.0
      %v658 = vadd.f32 %v650, 0.0
      %v659 = vadd.f32 %v651, 0.0
      %v660 = vld [vmem:[%s332] sm:$0x5]
      %v661 = vld [vmem:[%s332 + $0x4] sm:$0x5]
      %v662 = vld [vmem:[%s332 + $0x8] sm:$0x5]
      %v663 = vld [vmem:[%s332 + $0xc] sm:$0x5]
      %v664 = vld [vmem:[%s342] sm:$0x5]
      %v665 = vld [vmem:[%s342 + $0x4] sm:$0x5]
      %v669 = vunpack.c.l.s4 1983009808
      %v670 = vunpack.c.0.s8 %v669
      %v671 = vlaneseq
      %v672 = vshrl.u32 %v671, 7
      %v673 = vsub.s32 %v670, %v672
      %v674 = vrot.slane %v664, %v673
      %v675 = vcombine.high %v674, %v674
      %v677 = vunpack.c.l.s4 1983009808
      %v678 = vunpack.c.0.s8 %v677
      %v679 = vlaneseq
      %v680 = vshrl.u32 %v679, 7
      %v681 = vsub.s32 %v678, %v680
      %v682 = vrot.slane %v665, %v681
      %v683 = vcombine.high %v682, %v682
      %v684 = vunpack.c.l.b16 %v674
      %v685 = vunpack.c.l.b16 %v675
      %v686 = vunpack.c.l.b16 %v682
      %v687 = vunpack.c.l.b16 %v683
      %v688 = vrot.slane %v684, 1
      %v689 = vsel %vm426, %v686, %v688
      %v690 = vrot.slane %v685, 1
      %v691 = vsel %vm426, %v687, %v690
      %v692 = vpack.c.b16 %v689, %v689
      %v693 = vpack.c.b16 %v691, %v691
      %v695 = vsel %vm439, %v692, 0
      %v698 = vsel %vm439, %v693, 0
      %700 = vmatprep.subr.bf16.mxu0 %v698
      %701 = vmatpush1.bf16.msra.mxu0 %v695
      %702 = vmatprep.subr.bf16.mxu0 0
      %703 = vmatpush1.bf16.msra.mxu0 0
      %704 = vmatprep.subr.bf16.mxu0 0
      %705 = vmatpush1.bf16.msra.mxu0 0
      %706 = vmatprep.subr.bf16.mxu0 0
      %707 = vmatpush1.bf16.msra.mxu0 0
      %708 = vmatprep.subr.bf16.mxu0 0
      %709 = vmatpush1.bf16.msra.mxu0 0
      %710 = vmatprep.subr.bf16.mxu0 0
      %711 = vmatpush1.bf16.msra.mxu0 0
      %712 = vmatprep.subr.bf16.mxu0 0
      %713 = vmatpush1.bf16.msra.mxu0 0
      %714 = vmatprep.subr.bf16.mxu0 0
      %715 = vmatpush1.bf16.msra.mxu0 0
      %716 = vmatprep.subr.bf16.mxu0 0
      %717 = vmatpush1.bf16.msra.mxu0 0
      %718 = vmatprep.subr.bf16.mxu0 0
      %719 = vmatpush1.bf16.msra.mxu0 0
      %720 = vmatprep.subr.bf16.mxu0 0
      %721 = vmatpush1.bf16.msra.mxu0 0
      %722 = vmatprep.subr.bf16.mxu0 0
      %723 = vmatpush1.bf16.msra.mxu0 0
      %724 = vmatprep.subr.bf16.mxu0 0
      %725 = vmatpush1.bf16.msra.mxu0 0
      %726 = vmatprep.subr.bf16.mxu0 0
      %727 = vmatpush1.bf16.msra.mxu0 0
      %728 = vmatprep.subr.bf16.mxu0 0
      %729 = vmatpush1.bf16.msra.mxu0 0
      %730 = vmatprep.subr.bf16.mxu0 0
      %731 = vmatpush1.bf16.msra.mxu0 0
      %732 = vmatprep.mubr.bf16.mxu0 0
      %733 = vmatmul.mubr.bf16.gmra.mrb[0].mxu0 %v434
      %v734 = vpop.f32.mrb[0].mxu0
      %v735 = vadd.f32 0.0, %v734
      %v736 = vpop.f32.mrb[0].mxu0
      %v737 = vadd.f32 0.0, %v736
      %v738 = vpop.f32.mrb[0].mxu0
      %v739 = vadd.f32 0.0, %v738
      %v740 = vpop.f32.mrb[0].mxu0
      %v741 = vadd.f32 0.0, %v740
      %742 = vmatprep.mubr.bf16.mxu0 0
      %743 = vmatmul.mubr.bf16.gmra.mrb[0].mxu0 %v437
      %v744 = vpop.f32.mrb[0].mxu0
      %v745 = vadd.f32 0.0, %v744
      %v746 = vpop.f32.mrb[0].mxu0
      %v747 = vadd.f32 0.0, %v746
      %v748 = vpop.f32.mrb[0].mxu0
      %v749 = vadd.f32 0.0, %v748
      %v750 = vpop.f32.mrb[0].mxu0
      %v751 = vadd.f32 0.0, %v750
      %752 = vdwg.mxu0
      %v758 = vunpack.c.l.s4 1983009808
      %v759 = vunpack.c.0.s8 %v758
      %v760 = vlaneseq
      %v761 = vshrl.u32 %v760, 7
      %v762 = vsub.s32 %v759, %v761
      %v763 = vrot.slane %v660, %v762
      %v764 = vcombine.high %v763, %v763
      %v766 = vunpack.c.l.s4 1983009808
      %v767 = vunpack.c.0.s8 %v766
      %v768 = vlaneseq
      %v769 = vshrl.u32 %v768, 7
      %v770 = vsub.s32 %v767, %v769
      %v771 = vrot.slane %v661, %v770
      %v772 = vcombine.high %v771, %v771
      %v774 = vunpack.c.l.s4 1983009808
      %v775 = vunpack.c.0.s8 %v774
      %v776 = vlaneseq
      %v777 = vshrl.u32 %v776, 7
      %v778 = vsub.s32 %v775, %v777
      %v779 = vrot.slane %v662, %v778
      %v780 = vcombine.high %v779, %v779
      %v782 = vunpack.c.l.s4 1983009808
      %v783 = vunpack.c.0.s8 %v782
      %v784 = vlaneseq
      %v785 = vshrl.u32 %v784, 7
      %v786 = vsub.s32 %v783, %v785
      %v787 = vrot.slane %v663, %v786
      %v788 = vcombine.high %v787, %v787
      %v789 = vunpack.c.l.b16 %v763
      %v790 = vunpack.c.l.b16 %v764
      %v791 = vunpack.c.l.b16 %v771
      %v792 = vunpack.c.l.b16 %v772
      %v793 = vunpack.c.l.b16 %v779
      %v794 = vunpack.c.l.b16 %v780
      %v795 = vunpack.c.l.b16 %v787
      %v796 = vunpack.c.l.b16 %v788
      %v797 = vrot.slane %v789, 1
      %v798 = vsel %vm426, %v791, %v797
      %v799 = vrot.slane %v793, 7
      %v800 = vsel %vm556, %v799, %v798
      %v801 = vrot.slane %v795, 6
      %v802 = vsel %vm559, %v801, %v800
      %v803 = vrot.slane %v790, 1
      %v804 = vsel %vm426, %v792, %v803
      %v805 = vrot.slane %v794, 7
      %v806 = vsel %vm556, %v805, %v804
      %v807 = vrot.slane %v796, 6
      %v808 = vsel %vm559, %v807, %v806
      %v809 = vpack.c.b16 %v802, %v802
      %v810 = vpack.c.b16 %v808, %v808
      %v812 = vsel %vm576, %v809, 0
      %v815 = vsel %vm576, %v810, 0
      %817 = vmatprep.subr.bf16.mxu0 %v815
      %818 = vmatpush1.bf16.msra.mxu0 %v812
      %819 = vmatprep.subr.bf16.mxu0 0
      %820 = vmatpush1.bf16.msra.mxu0 0
      %821 = vmatprep.subr.bf16.mxu0 0
      %822 = vmatpush1.bf16.msra.mxu0 0
      %823 = vmatprep.subr.bf16.mxu0 0
      %824 = vmatpush1.bf16.msra.mxu0 0
      %825 = vmatprep.subr.bf16.mxu0 0
      %826 = vmatpush1.bf16.msra.mxu0 0
      %827 = vmatprep.subr.bf16.mxu0 0
      %828 = vmatpush1.bf16.msra.mxu0 0
      %829 = vmatprep.subr.bf16.mxu0 0
      %830 = vmatpush1.bf16.msra.mxu0 0
      %831 = vmatprep.subr.bf16.mxu0 0
      %832 = vmatpush1.bf16.msra.mxu0 0
      %833 = vmatprep.subr.bf16.mxu0 0
      %834 = vmatpush1.bf16.msra.mxu0 0
      %835 = vmatprep.subr.bf16.mxu0 0
      %836 = vmatpush1.bf16.msra.mxu0 0
      %837 = vmatprep.subr.bf16.mxu0 0
      %838 = vmatpush1.bf16.msra.mxu0 0
      %839 = vmatprep.subr.bf16.mxu0 0
      %840 = vmatpush1.bf16.msra.mxu0 0
      %841 = vmatprep.subr.bf16.mxu0 0
      %842 = vmatpush1.bf16.msra.mxu0 0
      %843 = vmatprep.subr.bf16.mxu0 0
      %844 = vmatpush1.bf16.msra.mxu0 0
      %845 = vmatprep.subr.bf16.mxu0 0
      %846 = vmatpush1.bf16.msra.mxu0 0
      %847 = vmatprep.subr.bf16.mxu0 0
      %848 = vmatpush1.bf16.msra.mxu0 0
      %849 = vmatprep.mubr.bf16.mxu0 0
      %850 = vmatmul.mubr.bf16.gmra.mrb[0].mxu0 %v571
      %v851 = vpop.f32.mrb[0].mxu0
      %v852 = vadd.f32 %v735, %v851
      %v853 = vpop.f32.mrb[0].mxu0
      %v854 = vadd.f32 %v737, %v853
      %v855 = vpop.f32.mrb[0].mxu0
      %v856 = vadd.f32 %v739, %v855
      %v857 = vpop.f32.mrb[0].mxu0
      %v858 = vadd.f32 %v741, %v857
      %859 = vmatprep.mubr.bf16.mxu0 0
      %860 = vmatmul.mubr.bf16.gmra.mrb[0].mxu0 %v574
      %v861 = vpop.f32.mrb[0].mxu0
      %v862 = vadd.f32 %v745, %v861
      %v863 = vpop.f32.mrb[0].mxu0
      %v864 = vadd.f32 %v747, %v863
      %v865 = vpop.f32.mrb[0].mxu0
      %v866 = vadd.f32 %v749, %v865
      %v867 = vpop.f32.mrb[0].mxu0
      %v868 = vadd.f32 %v751, %v867
      %869 = vdwg.mxu0
      %v870 = vadd.f32 %v852, %v370
      %v871 = vadd.f32 %v854, %v370
      %v872 = vadd.f32 %v856, %v375
      %v873 = vadd.f32 %v858, %v375
      %v874 = vadd.f32 %v862, %v380
      %v875 = vadd.f32 %v864, %v380
      %v876 = vadd.f32 %v866, %v385
      %v877 = vadd.f32 %v868, %v385
      %v878 = vmax.f32 %v870, 0.0
      %v879 = vmax.f32 %v871, 0.0
      %v880 = vmax.f32 %v872, 0.0
      %v881 = vmax.f32 %v873, 0.0
      %v882 = vmax.f32 %v874, 0.0
      %v883 = vmax.f32 %v875, 0.0
      %v884 = vmax.f32 %v876, 0.0
      %v885 = vmax.f32 %v877, 0.0
      %v886 = vadd.f32 %v652, %v878
      %v887 = vadd.f32 %v653, %v879
      %v888 = vadd.f32 %v654, %v880
      %v889 = vadd.f32 %v655, %v881
      %v890 = vadd.f32 %v656, %v882
      %v891 = vadd.f32 %v657, %v883
      %v892 = vadd.f32 %v658, %v884
      %v893 = vadd.f32 %v659, %v885
      %v894 = vld [vmem:[%s332] sm:$0xa]
      %v895 = vld [vmem:[%s332 + $0x4] sm:$0xa]
      %v896 = vld [vmem:[%s332 + $0x8] sm:$0xa]
      %v897 = vld [vmem:[%s332 + $0xc] sm:$0xa]
      %v898 = vld [vmem:[%s342] sm:$0xa]
      %v899 = vld [vmem:[%s342 + $0x4] sm:$0xa]
      %v903 = vunpack.c.l.s4 1983009808
      %v904 = vunpack.c.0.s8 %v903
      %v905 = vlaneseq
      %v906 = vshrl.u32 %v905, 7
      %v907 = vsub.s32 %v904, %v906
      %v908 = vrot.slane %v898, %v907
      %v909 = vcombine.high %v908, %v908
      %v911 = vunpack.c.l.s4 1983009808
      %v912 = vunpack.c.0.s8 %v911
      %v913 = vlaneseq
      %v914 = vshrl.u32 %v913, 7
      %v915 = vsub.s32 %v912, %v914
      %v916 = vrot.slane %v899, %v915
      %v917 = vcombine.high %v916, %v916
      %v918 = vunpack.c.l.b16 %v908
      %v919 = vunpack.c.l.b16 %v909
      %v920 = vunpack.c.l.b16 %v916
      %v921 = vunpack.c.l.b16 %v917
      %v922 = vrot.slane %v918, 2
      %v923 = vrot.slane %v920, 1
      %v924 = vsel %vm426, %v923, %v922
      %v925 = vrot.slane %v919, 2
      %v926 = vrot.slane %v921, 1
      %v927 = vsel %vm426, %v926, %v925
      %v928 = vpack.c.b16 %v924, %v924
      %v929 = vpack.c.b16 %v927, %v927
      %v931 = vsel %vm439, %v928, 0
      %v934 = vsel %vm439, %v929, 0
      %936 = vmatprep.subr.bf16.mxu0 %v934
      %937 = vmatpush1.bf16.msra.mxu0 %v931
      %938 = vmatprep.subr.bf16.mxu0 0
      %939 = vmatpush1.bf16.msra.mxu0 0
      %940 = vmatprep.subr.bf16.mxu0 0
      %941 = vmatpush1.bf16.msra.mxu0 0
      %942 = vmatprep.subr.bf16.mxu0 0
      %943 = vmatpush1.bf16.msra.mxu0 0
      %944 = vmatprep.subr.bf16.mxu0 0
      %945 = vmatpush1.bf16.msra.mxu0 0
      %946 = vmatprep.subr.bf16.mxu0 0
      %947 = vmatpush1.bf16.msra.mxu0 0
      %948 = vmatprep.subr.bf16.mxu0 0
      %949 = vmatpush1.bf16.msra.mxu0 0
      %950 = vmatprep.subr.bf16.mxu0 0
      %951 = vmatpush1.bf16.msra.mxu0 0
      %952 = vmatprep.subr.bf16.mxu0 0
      %953 = vmatpush1.bf16.msra.mxu0 0
      %954 = vmatprep.subr.bf16.mxu0 0
      %955 = vmatpush1.bf16.msra.mxu0 0
      %956 = vmatprep.subr.bf16.mxu0 0
      %957 = vmatpush1.bf16.msra.mxu0 0
      %958 = vmatprep.subr.bf16.mxu0 0
      %959 = vmatpush1.bf16.msra.mxu0 0
      %960 = vmatprep.subr.bf16.mxu0 0
      %961 = vmatpush1.bf16.msra.mxu0 0
      %962 = vmatprep.subr.bf16.mxu0 0
      %963 = vmatpush1.bf16.msra.mxu0 0
      %964 = vmatprep.subr.bf16.mxu0 0
      %965 = vmatpush1.bf16.msra.mxu0 0
      %966 = vmatprep.subr.bf16.mxu0 0
      %967 = vmatpush1.bf16.msra.mxu0 0
      %968 = vmatprep.mubr.bf16.mxu0 0
      %969 = vmatmul.mubr.bf16.gmra.mrb[0].mxu0 %v434
      %v970 = vpop.f32.mrb[0].mxu0
      %v971 = vadd.f32 0.0, %v970
      %v972 = vpop.f32.mrb[0].mxu0
      %v973 = vadd.f32 0.0, %v972
      %v974 = vpop.f32.mrb[0].mxu0
      %v975 = vadd.f32 0.0, %v974
      %v976 = vpop.f32.mrb[0].mxu0
      %v977 = vadd.f32 0.0, %v976
      %978 = vmatprep.mubr.bf16.mxu0 0
      %979 = vmatmul.mubr.bf16.gmra.mrb[0].mxu0 %v437
      %v980 = vpop.f32.mrb[0].mxu0
      %v981 = vadd.f32 0.0, %v980
      %v982 = vpop.f32.mrb[0].mxu0
      %v983 = vadd.f32 0.0, %v982
      %v984 = vpop.f32.mrb[0].mxu0
      %v985 = vadd.f32 0.0, %v984
      %v986 = vpop.f32.mrb[0].mxu0
      %v987 = vadd.f32 0.0, %v986
      %988 = vdwg.mxu0
      %v994 = vunpack.c.l.s4 1983009808
      %v995 = vunpack.c.0.s8 %v994
      %v996 = vlaneseq
      %v997 = vshrl.u32 %v996, 7
      %v998 = vsub.s32 %v995, %v997
      %v999 = vrot.slane %v894, %v998
      %v1000 = vcombine.high %v999, %v999
      %v1002 = vunpack.c.l.s4 1983009808
      %v1003 = vunpack.c.0.s8 %v1002
      %v1004 = vlaneseq
      %v1005 = vshrl.u32 %v1004, 7
      %v1006 = vsub.s32 %v1003, %v1005
      %v1007 = vrot.slane %v895, %v1006
      %v1008 = vcombine.high %v1007, %v1007
      %v1010 = vunpack.c.l.s4 1983009808
      %v1011 = vunpack.c.0.s8 %v1010
      %v1012 = vlaneseq
      %v1013 = vshrl.u32 %v1012, 7
      %v1014 = vsub.s32 %v1011, %v1013
      %v1015 = vrot.slane %v896, %v1014
      %v1016 = vcombine.high %v1015, %v1015
      %v1018 = vunpack.c.l.s4 1983009808
      %v1019 = vunpack.c.0.s8 %v1018
      %v1020 = vlaneseq
      %v1021 = vshrl.u32 %v1020, 7
      %v1022 = vsub.s32 %v1019, %v1021
      %v1023 = vrot.slane %v897, %v1022
      %v1024 = vcombine.high %v1023, %v1023
      %v1025 = vunpack.c.l.b16 %v999
      %v1026 = vunpack.c.l.b16 %v1000
      %v1027 = vunpack.c.l.b16 %v1007
      %v1028 = vunpack.c.l.b16 %v1008
      %v1029 = vunpack.c.l.b16 %v1015
      %v1030 = vunpack.c.l.b16 %v1016
      %v1031 = vunpack.c.l.b16 %v1023
      %v1032 = vunpack.c.l.b16 %v1024
      %v1033 = vrot.slane %v1025, 2
      %v1034 = vrot.slane %v1027, 1
      %v1035 = vsel %vm426, %v1034, %v1033
      %v1036 = vsel %vm556, %v1029, %v1035
      %v1037 = vrot.slane %v1031, 7
      %v1038 = vsel %vm559, %v1037, %v1036
      %v1039 = vrot.slane %v1026, 2
      %v1040 = vrot.slane %v1028, 1
      %v1041 = vsel %vm426, %v1040, %v1039
      %v1042 = vsel %vm556, %v1030, %v1041
      %v1043 = vrot.slane %v1032, 7
      %v1044 = vsel %vm559, %v1043, %v1042
      %v1045 = vpack.c.b16 %v1038, %v1038
      %v1046 = vpack.c.b16 %v1044, %v1044
      %v1048 = vsel %vm576, %v1045, 0
      %v1051 = vsel %vm576, %v1046, 0
      %1053 = vmatprep.subr.bf16.mxu0 %v1051
      %1054 = vmatpush1.bf16.msra.mxu0 %v1048
      %1055 = vmatprep.subr.bf16.mxu0 0
      %1056 = vmatpush1.bf16.msra.mxu0 0
      %1057 = vmatprep.subr.bf16.mxu0 0
      %1058 = vmatpush1.bf16.msra.mxu0 0
      %1059 = vmatprep.subr.bf16.mxu0 0
      %1060 = vmatpush1.bf16.msra.mxu0 0
      %1061 = vmatprep.subr.bf16.mxu0 0
      %1062 = vmatpush1.bf16.msra.mxu0 0
      %1063 = vmatprep.subr.bf16.mxu0 0
      %1064 = vmatpush1.bf16.msra.mxu0 0
      %1065 = vmatprep.subr.bf16.mxu0 0
      %1066 = vmatpush1.bf16.msra.mxu0 0
      %1067 = vmatprep.subr.bf16.mxu0 0
      %1068 = vmatpush1.bf16.msra.mxu0 0
      %1069 = vmatprep.subr.bf16.mxu0 0
      %1070 = vmatpush1.bf16.msra.mxu0 0
      %1071 = vmatprep.subr.bf16.mxu0 0
      %1072 = vmatpush1.bf16.msra.mxu0 0
      %1073 = vmatprep.subr.bf16.mxu0 0
      %1074 = vmatpush1.bf16.msra.mxu0 0
      %1075 = vmatprep.subr.bf16.mxu0 0
      %1076 = vmatpush1.bf16.msra.mxu0 0
      %1077 = vmatprep.subr.bf16.mxu0 0
      %1078 = vmatpush1.bf16.msra.mxu0 0
      %1079 = vmatprep.subr.bf16.mxu0 0
      %1080 = vmatpush1.bf16.msra.mxu0 0
      %1081 = vmatprep.subr.bf16.mxu0 0
      %1082 = vmatpush1.bf16.msra.mxu0 0
      %1083 = vmatprep.subr.bf16.mxu0 0
      %1084 = vmatpush1.bf16.msra.mxu0 0
      %1085 = vmatprep.mubr.bf16.mxu0 0
      %1086 = vmatmul.mubr.bf16.gmra.mrb[0].mxu0 %v571
      %v1087 = vpop.f32.mrb[0].mxu0
      %v1088 = vadd.f32 %v971, %v1087
      %v1089 = vpop.f32.mrb[0].mxu0
      %v1090 = vadd.f32 %v973, %v1089
      %v1091 = vpop.f32.mrb[0].mxu0
      %v1092 = vadd.f32 %v975, %v1091
      %v1093 = vpop.f32.mrb[0].mxu0
      %v1094 = vadd.f32 %v977, %v1093
      %1095 = vmatprep.mubr.bf16.mxu0 0
      %1096 = vmatmul.mubr.bf16.gmra.mrb[0].mxu0 %v574
      %v1097 = vpop.f32.mrb[0].mxu0
      %v1098 = vadd.f32 %v981, %v1097
      %v1099 = vpop.f32.mrb[0].mxu0
      %v1100 = vadd.f32 %v983, %v1099
      %v1101 = vpop.f32.mrb[0].mxu0
      %v1102 = vadd.f32 %v985, %v1101
      %v1103 = vpop.f32.mrb[0].mxu0
      %v1104 = vadd.f32 %v987, %v1103
      %1105 = vdwg.mxu0
      %v1106 = vadd.f32 %v1088, %v370
      %v1107 = vadd.f32 %v1090, %v370
      %v1108 = vadd.f32 %v1092, %v375
      %v1109 = vadd.f32 %v1094, %v375
      %v1110 = vadd.f32 %v1098, %v380
      %v1111 = vadd.f32 %v1100, %v380
      %v1112 = vadd.f32 %v1102, %v385
      %v1113 = vadd.f32 %v1104, %v385
      %v1114 = vmax.f32 %v1106, 0.0
      %v1115 = vmax.f32 %v1107, 0.0
      %v1116 = vmax.f32 %v1108, 0.0
      %v1117 = vmax.f32 %v1109, 0.0
      %v1118 = vmax.f32 %v1110, 0.0
      %v1119 = vmax.f32 %v1111, 0.0
      %v1120 = vmax.f32 %v1112, 0.0
      %v1121 = vmax.f32 %v1113, 0.0
      %v1122 = vadd.f32 %v886, %v1114
      %v1123 = vadd.f32 %v887, %v1115
      %v1124 = vadd.f32 %v888, %v1116
      %v1125 = vadd.f32 %v889, %v1117
      %v1126 = vadd.f32 %v890, %v1118
      %v1127 = vadd.f32 %v891, %v1119
      %v1128 = vadd.f32 %v892, %v1120
      %v1129 = vadd.f32 %v893, %v1121
      %v1130 = vld [vmem:[%s332] sm:$0xa]
      %v1131 = vld [vmem:[%s332 + $0x4] sm:$0xa]
      %v1132 = vld [vmem:[%s332 + $0x8] sm:$0xa]
      %v1133 = vld [vmem:[%s332 + $0xc] sm:$0xa]
      %v1134 = vld [vmem:[%s342] sm:$0xa]
      %v1135 = vld [vmem:[%s342 + $0x4] sm:$0xa]
      %v1139 = vunpack.c.l.s4 1983009808
      %v1140 = vunpack.c.0.s8 %v1139
      %v1141 = vlaneseq
      %v1142 = vshrl.u32 %v1141, 7
      %v1143 = vsub.s32 %v1140, %v1142
      %v1144 = vrot.slane %v1134, %v1143
      %v1145 = vcombine.high %v1144, %v1144
      %v1147 = vunpack.c.l.s4 1983009808
      %v1148 = vunpack.c.0.s8 %v1147
      %v1149 = vlaneseq
      %v1150 = vshrl.u32 %v1149, 7
      %v1151 = vsub.s32 %v1148, %v1150
      %v1152 = vrot.slane %v1135, %v1151
      %v1153 = vcombine.high %v1152, %v1152
      %v1154 = vunpack.c.l.b16 %v1144
      %v1155 = vunpack.c.l.b16 %v1145
      %v1156 = vunpack.c.l.b16 %v1152
      %v1157 = vunpack.c.l.b16 %v1153
      %v1158 = vrot.slane %v1154, 3
      %v1159 = vrot.slane %v1156, 2
      %v1160 = vsel %vm426, %v1159, %v1158
      %v1161 = vrot.slane %v1155, 3
      %v1162 = vrot.slane %v1157, 2
      %v1163 = vsel %vm426, %v1162, %v1161
      %v1164 = vpack.c.b16 %v1160, %v1160
      %v1165 = vpack.c.b16 %v1163, %v1163
      %v1167 = vsel %vm439, %v1164, 0
      %v1170 = vsel %vm439, %v1165, 0
      %1172 = vmatprep.subr.bf16.mxu0 %v1170
      %1173 = vmatpush1.bf16.msra.mxu0 %v1167
      %1174 = vmatprep.subr.bf16.mxu0 0
      %1175 = vmatpush1.bf16.msra.mxu0 0
      %1176 = vmatprep.subr.bf16.mxu0 0
      %1177 = vmatpush1.bf16.msra.mxu0 0
      %1178 = vmatprep.subr.bf16.mxu0 0
      %1179 = vmatpush1.bf16.msra.mxu0 0
      %1180 = vmatprep.subr.bf16.mxu0 0
      %1181 = vmatpush1.bf16.msra.mxu0 0
      %1182 = vmatprep.subr.bf16.mxu0 0
      %1183 = vmatpush1.bf16.msra.mxu0 0
      %1184 = vmatprep.subr.bf16.mxu0 0
      %1185 = vmatpush1.bf16.msra.mxu0 0
      %1186 = vmatprep.subr.bf16.mxu0 0
      %1187 = vmatpush1.bf16.msra.mxu0 0
      %1188 = vmatprep.subr.bf16.mxu0 0
      %1189 = vmatpush1.bf16.msra.mxu0 0
      %1190 = vmatprep.subr.bf16.mxu0 0
      %1191 = vmatpush1.bf16.msra.mxu0 0
      %1192 = vmatprep.subr.bf16.mxu0 0
      %1193 = vmatpush1.bf16.msra.mxu0 0
      %1194 = vmatprep.subr.bf16.mxu0 0
      %1195 = vmatpush1.bf16.msra.mxu0 0
      %1196 = vmatprep.subr.bf16.mxu0 0
      %1197 = vmatpush1.bf16.msra.mxu0 0
      %1198 = vmatprep.subr.bf16.mxu0 0
      %1199 = vmatpush1.bf16.msra.mxu0 0
      %1200 = vmatprep.subr.bf16.mxu0 0
      %1201 = vmatpush1.bf16.msra.mxu0 0
      %1202 = vmatprep.subr.bf16.mxu0 0
      %1203 = vmatpush1.bf16.msra.mxu0 0
      %1204 = vmatprep.mubr.bf16.mxu0 0
      %1205 = vmatmul.mubr.bf16.gmra.mrb[0].mxu0 %v434
      %v1206 = vpop.f32.mrb[0].mxu0
      %v1207 = vadd.f32 0.0, %v1206
      %v1208 = vpop.f32.mrb[0].mxu0
      %v1209 = vadd.f32 0.0, %v1208
      %v1210 = vpop.f32.mrb[0].mxu0
      %v1211 = vadd.f32 0.0, %v1210
      %v1212 = vpop.f32.mrb[0].mxu0
      %v1213 = vadd.f32 0.0, %v1212
      %1214 = vmatprep.mubr.bf16.mxu0 0
      %1215 = vmatmul.mubr.bf16.gmra.mrb[0].mxu0 %v437
      %v1216 = vpop.f32.mrb[0].mxu0
      %v1217 = vadd.f32 0.0, %v1216
      %v1218 = vpop.f32.mrb[0].mxu0
      %v1219 = vadd.f32 0.0, %v1218
      %v1220 = vpop.f32.mrb[0].mxu0
      %v1221 = vadd.f32 0.0, %v1220
      %v1222 = vpop.f32.mrb[0].mxu0
      %v1223 = vadd.f32 0.0, %v1222
      %1224 = vdwg.mxu0
      %v1230 = vunpack.c.l.s4 1983009808
      %v1231 = vunpack.c.0.s8 %v1230
      %v1232 = vlaneseq
      %v1233 = vshrl.u32 %v1232, 7
      %v1234 = vsub.s32 %v1231, %v1233
      %v1235 = vrot.slane %v1130, %v1234
      %v1236 = vcombine.high %v1235, %v1235
      %v1238 = vunpack.c.l.s4 1983009808
      %v1239 = vunpack.c.0.s8 %v1238
      %v1240 = vlaneseq
      %v1241 = vshrl.u32 %v1240, 7
      %v1242 = vsub.s32 %v1239, %v1241
      %v1243 = vrot.slane %v1131, %v1242
      %v1244 = vcombine.high %v1243, %v1243
      %v1246 = vunpack.c.l.s4 1983009808
      %v1247 = vunpack.c.0.s8 %v1246
      %v1248 = vlaneseq
      %v1249 = vshrl.u32 %v1248, 7
      %v1250 = vsub.s32 %v1247, %v1249
      %v1251 = vrot.slane %v1132, %v1250
      %v1252 = vcombine.high %v1251, %v1251
      %v1254 = vunpack.c.l.s4 1983009808
      %v1255 = vunpack.c.0.s8 %v1254
      %v1256 = vlaneseq
      %v1257 = vshrl.u32 %v1256, 7
      %v1258 = vsub.s32 %v1255, %v1257
      %v1259 = vrot.slane %v1133, %v1258
      %v1260 = vcombine.high %v1259, %v1259
      %v1261 = vunpack.c.l.b16 %v1235
      %v1262 = vunpack.c.l.b16 %v1236
      %v1263 = vunpack.c.l.b16 %v1243
      %v1264 = vunpack.c.l.b16 %v1244
      %v1265 = vunpack.c.l.b16 %v1251
      %v1266 = vunpack.c.l.b16 %v1252
      %v1267 = vunpack.c.l.b16 %v1259
      %v1268 = vunpack.c.l.b16 %v1260
      %v1269 = vrot.slane %v1261, 3
      %v1270 = vrot.slane %v1263, 2
      %v1271 = vsel %vm426, %v1270, %v1269
      %v1272 = vrot.slane %v1265, 1
      %v1273 = vsel %vm556, %v1272, %v1271
      %v1274 = vsel %vm559, %v1267, %v1273
      %v1275 = vrot.slane %v1262, 3
      %v1276 = vrot.slane %v1264, 2
      %v1277 = vsel %vm426, %v1276, %v1275
      %v1278 = vrot.slane %v1266, 1
      %v1279 = vsel %vm556, %v1278, %v1277
      %v1280 = vsel %vm559, %v1268, %v1279
      %v1281 = vpack.c.b16 %v1274, %v1274
      %v1282 = vpack.c.b16 %v1280, %v1280
      %v1284 = vsel %vm576, %v1281, 0
      %v1287 = vsel %vm576, %v1282, 0
      %1289 = vmatprep.subr.bf16.mxu0 %v1287
      %1290 = vmatpush1.bf16.msra.mxu0 %v1284
      %1291 = vmatprep.subr.bf16.mxu0 0
      %1292 = vmatpush1.bf16.msra.mxu0 0
      %1293 = vmatprep.subr.bf16.mxu0 0
      %1294 = vmatpush1.bf16.msra.mxu0 0
      %1295 = vmatprep.subr.bf16.mxu0 0
      %1296 = vmatpush1.bf16.msra.mxu0 0
      %1297 = vmatprep.subr.bf16.mxu0 0
      %1298 = vmatpush1.bf16.msra.mxu0 0
      %1299 = vmatprep.subr.bf16.mxu0 0
      %1300 = vmatpush1.bf16.msra.mxu0 0
      %1301 = vmatprep.subr.bf16.mxu0 0
      %1302 = vmatpush1.bf16.msra.mxu0 0
      %1303 = vmatprep.subr.bf16.mxu0 0
      %1304 = vmatpush1.bf16.msra.mxu0 0
      %1305 = vmatprep.subr.bf16.mxu0 0
      %1306 = vmatpush1.bf16.msra.mxu0 0
      %1307 = vmatprep.subr.bf16.mxu0 0
      %1308 = vmatpush1.bf16.msra.mxu0 0
      %1309 = vmatprep.subr.bf16.mxu0 0
      %1310 = vmatpush1.bf16.msra.mxu0 0
      %1311 = vmatprep.subr.bf16.mxu0 0
      %1312 = vmatpush1.bf16.msra.mxu0 0
      %1313 = vmatprep.subr.bf16.mxu0 0
      %1314 = vmatpush1.bf16.msra.mxu0 0
      %1315 = vmatprep.subr.bf16.mxu0 0
      %1316 = vmatpush1.bf16.msra.mxu0 0
      %1317 = vmatprep.subr.bf16.mxu0 0
      %1318 = vmatpush1.bf16.msra.mxu0 0
      %1319 = vmatprep.subr.bf16.mxu0 0
      %1320 = vmatpush1.bf16.msra.mxu0 0
      %1321 = vmatprep.mubr.bf16.mxu0 0
      %1322 = vmatmul.mubr.bf16.gmra.mrb[0].mxu0 %v571
      %v1323 = vpop.f32.mrb[0].mxu0
      %v1324 = vadd.f32 %v1207, %v1323
      %v1325 = vpop.f32.mrb[0].mxu0
      %v1326 = vadd.f32 %v1209, %v1325
      %v1327 = vpop.f32.mrb[0].mxu0
      %v1328 = vadd.f32 %v1211, %v1327
      %v1329 = vpop.f32.mrb[0].mxu0
      %v1330 = vadd.f32 %v1213, %v1329
      %1331 = vmatprep.mubr.bf16.mxu0 0
      %1332 = vmatmul.mubr.bf16.gmra.mrb[0].mxu0 %v574
      %v1333 = vpop.f32.mrb[0].mxu0
      %v1334 = vadd.f32 %v1217, %v1333
      %v1335 = vpop.f32.mrb[0].mxu0
      %v1336 = vadd.f32 %v1219, %v1335
      %v1337 = vpop.f32.mrb[0].mxu0
      %v1338 = vadd.f32 %v1221, %v1337
      %v1339 = vpop.f32.mrb[0].mxu0
      %v1340 = vadd.f32 %v1223, %v1339
      %1341 = vdwg.mxu0
      %v1342 = vadd.f32 %v1324, %v370
      %v1343 = vadd.f32 %v1326, %v370
      %v1344 = vadd.f32 %v1328, %v375
      %v1345 = vadd.f32 %v1330, %v375
      %v1346 = vadd.f32 %v1334, %v380
      %v1347 = vadd.f32 %v1336, %v380
      %v1348 = vadd.f32 %v1338, %v385
      %v1349 = vadd.f32 %v1340, %v385
      %v1350 = vmax.f32 %v1342, 0.0
      %v1351 = vmax.f32 %v1343, 0.0
      %v1352 = vmax.f32 %v1344, 0.0
      %v1353 = vmax.f32 %v1345, 0.0
      %v1354 = vmax.f32 %v1346, 0.0
      %v1355 = vmax.f32 %v1347, 0.0
      %v1356 = vmax.f32 %v1348, 0.0
      %v1357 = vmax.f32 %v1349, 0.0
      %v1358 = vadd.f32 %v1122, %v1350
      %v1359 = vadd.f32 %v1123, %v1351
      %v1360 = vadd.f32 %v1124, %v1352
      %v1361 = vadd.f32 %v1125, %v1353
      %v1362 = vadd.f32 %v1126, %v1354
      %v1363 = vadd.f32 %v1127, %v1355
      %v1364 = vadd.f32 %v1128, %v1356
      %v1365 = vadd.f32 %v1129, %v1357
      %v1366 = vld [vmem:[%s5] sm:$0x3]
      %v1367 = vld [vmem:[%s6] sm:$0x3]
      %1369 = vset.pattern.permute.xlu0 0
      %1370 = vperm.xlu0 %1369, %v1367
      %v1371 = vpop.permute.xlu0 %1370
      %vm1373 = vcmask 261120
      %v1375 = vsel %vm1373, %v1366, 0
      %1377 = vmatprep.subr.mxu0 %v1359
      %1378 = vmatpush1.msra.mxu0 %v1358
      %1379 = vmatprep.subr.mxu0 %v1361
      %1380 = vmatpush1.msra.mxu0 %v1360
      %1381 = vmatprep.subr.mxu0 %v1363
      %1382 = vmatpush1.msra.mxu0 %v1362
      %1383 = vmatprep.subr.mxu0 %v1365
      %1384 = vmatpush1.msra.mxu0 %v1364
      %1385 = vmatprep.subr.mxu0 0.0
      %1386 = vmatpush1.msra.mxu0 0.0
      %1387 = vmatprep.subr.mxu0 0.0
      %1388 = vmatpush1.msra.mxu0 0.0
      %1389 = vmatprep.subr.mxu0 0.0
      %1390 = vmatpush1.msra.mxu0 0.0
      %1391 = vmatprep.subr.mxu0 0.0
      %1392 = vmatpush1.msra.mxu0 0.0
      %1393 = vmatprep.subr.mxu0 0.0
      %1394 = vmatpush1.msra.mxu0 0.0
      %1395 = vmatprep.subr.mxu0 0.0
      %1396 = vmatpush1.msra.mxu0 0.0
      %1397 = vmatprep.subr.mxu0 0.0
      %1398 = vmatpush1.msra.mxu0 0.0
      %1399 = vmatprep.subr.mxu0 0.0
      %1400 = vmatpush1.msra.mxu0 0.0
      %1401 = vmatprep.subr.mxu0 0.0
      %1402 = vmatpush1.msra.mxu0 0.0
      %1403 = vmatprep.subr.mxu0 0.0
      %1404 = vmatpush1.msra.mxu0 0.0
      %1405 = vmatprep.subr.mxu0 0.0
      %1406 = vmatpush1.msra.mxu0 0.0
      %1407 = vmatprep.subr.mxu0 0.0
      %1408 = vmatpush1.msra.mxu0 0.0
      %1409 = vmatprep.subr.mxu0 0.0
      %1410 = vmatpush1.msra.mxu0 0.0
      %1411 = vmatprep.subr.mxu0 0.0
      %1412 = vmatpush1.msra.mxu0 0.0
      %1413 = vmatprep.subr.mxu0 0.0
      %1414 = vmatpush1.msra.mxu0 0.0
      %1415 = vmatprep.subr.mxu0 0.0
      %1416 = vmatpush1.msra.mxu0 0.0
      %1417 = vmatprep.subr.mxu0 0.0
      %1418 = vmatpush1.msra.mxu0 0.0
      %1419 = vmatprep.subr.mxu0 0.0
      %1420 = vmatpush1.msra.mxu0 0.0
      %1421 = vmatprep.subr.mxu0 0.0
      %1422 = vmatpush1.msra.mxu0 0.0
      %1423 = vmatprep.subr.mxu0 0.0
      %1424 = vmatpush1.msra.mxu0 0.0
      %1425 = vmatprep.subr.mxu0 0.0
      %1426 = vmatpush1.msra.mxu0 0.0
      %1427 = vmatprep.subr.mxu0 0.0
      %1428 = vmatpush1.msra.mxu0 0.0
      %1429 = vmatprep.subr.mxu0 0.0
      %1430 = vmatpush1.msra.mxu0 0.0
      %1431 = vmatprep.subr.mxu0 0.0
      %1432 = vmatpush1.msra.mxu0 0.0
      %1433 = vmatprep.subr.mxu0 0.0
      %1434 = vmatpush1.msra.mxu0 0.0
      %1435 = vmatprep.subr.mxu0 0.0
      %1436 = vmatpush1.msra.mxu0 0.0
      %1437 = vmatprep.subr.mxu0 0.0
      %1438 = vmatpush1.msra.mxu0 0.0
      %1439 = vmatprep.subr.mxu0 0.0
      %1440 = vmatpush1.msra.mxu0 0.0
      %1441 = vmatprep.mubr.f32.mxu0 0.0
      %1442 = vmatmul.mubr.f32.gmra.mrb[0].mxu0 %v1375
      %v1443 = vpop.f32.mrb[0].mxu0
      %v1444 = vadd.f32 %v1371, %v1443
      %v1445 = vpop.f32.mrb[0].mxu0
      %v1446 = vadd.f32 %v1371, %v1445
      %1447 = vdwg.mxu0
      %v1448 = vxor.u32 %v1444, 2147483648
      %v1449 = vxor.u32 %v1446, 2147483648
      %v1450 = vmul.f32 %v1448, 1.442695
      %v1451 = vpow.pop %v1450
      %v1452 = vmul.f32 %v1449, 1.442695
      %v1453 = vpow.pop %v1452
      %v1454 = vadd.f32 %v1451, 1.0
      %v1455 = vadd.f32 %v1453, 1.0
      %v1456 = vrcp.pop %v1454
      %v1457 = vmul.f32 1.0, %v1456
      %v1458 = vrcp.pop %v1455
      %v1459 = vmul.f32 1.0, %v1458
      %v1462 = vcombine.low %v1457, %v1459
      %v1464 = vunpack.c.l.s4 1983009808
      %v1465 = vunpack.c.0.s8 %v1464
      %v1466 = vlaneseq
      %v1467 = vshrl.u32 %v1466, 7
      %v1468 = vsub.s32 %v1465, %v1467
      %v1469 = vrot.slane %v1462, %v1468
      %1471 = vst [vmem:[%s352] sm:$0xf] %v1469
      %s1472 = smul.u32 2, %s23
      %p1473 = scmp.lt.s32.totalorder %s22, 1
      %s1474 = scalar_select %p1473, %s22, 1
      %p1475 = scmp.lt.s32.totalorder %s1472, 1
      %s1476 = scalar_select %p1475, %s1472, 1
      %s1477 = smul.addr %s1474, 2
      %s1478 = sadd.s32 %s1476, %s1477
      %s1479 = smul.addr %s1478, 2
      %s1480 = scalar_lea.vmem %s7, %s1479
      // Predicated region
      $region49: #{ptavit3dca_dn_forward.1} parent=47 // pred_check
        %p1481 = pneg %p211
      $region50: #{ptavit3dca_dn_forward.1} parent=47 // pred_check_branch
        %1483 = sbr.rel (%p1481) target = $region52
      $region51: #{ptavit3dca_dn_forward.1} parent=47 // pred_region
        %s1484 = smul.u32 2, %s23
      $region52: #{ptavit3dca_dn_forward.1} parent=47 // pred_fallthru
        _
    $region48: #{ptavit3dca_dn_forward.1} parent=5 // pred_fallthru
      _
    %p1485 = scmp.le.s32.totalorder 2, %s13
    // Predicated region
    $region53: #{ptavit3dca_dn_forward.1} parent=5 // pred_check
      %p1486 = pneg %p1485
    $region54: #{ptavit3dca_dn_forward.1} parent=5 // pred_check_branch
      %1488 = sbr.rel (%p1486) target = $region56
    $region55: #{ptavit3dca_dn_forward.1} parent=5 // pred_region
      %s1489 = ssub.s32 %s13, 2
      // Predicated region
      $region57: #{ptavit3dca_dn_forward.1} parent=55 // pred_check
        %p1490 = pneg %p217
      $region58: #{ptavit3dca_dn_forward.1} parent=55 // pred_check_branch
        %1492 = sbr.rel (%p1490) target = $region60
      $region59: #{ptavit3dca_dn_forward.1} parent=55 // pred_region
        %s1493 = smul.u32 2, %s25
        %p1494 = scmp.lt.s32.totalorder %s24, 1
        %s1495 = scalar_select %p1494, %s24, 1
        %p1496 = scmp.lt.s32.totalorder %s1493, 1
        %s1497 = scalar_select %p1496, %s1493, 1
        %s1498 = smul.addr %s1495, 2
        %s1499 = sadd.s32 %s1497, %s1498
        %s1500 = smul.addr %s1499, 2
        %s1501 = scalar_lea.vmem %s7, %s1500
      $region60: #{ptavit3dca_dn_forward.1} parent=55 // pred_fallthru
        _
    $region56: #{ptavit3dca_dn_forward.1} parent=5 // pred_fallthru
      _
  $region6: #{ptavit3dca_dn_forward.1} parent=0 // loop_footer
    %s17 = sadd.s32 1, %s13
  $region7: #{ptavit3dca_dn_forward.1} parent=0 // loop_footer_branch
    %12 = sbr.rel target = $region3
  $region8: #{ptavit3dca_dn_forward.1} parent=0 // loop_exit
    _

</llo_original>
